<compile_context>
chip_gen: v7x
topology: tpu7x:2x2x1
jax: 0.10.0
libtpu: 0.0.40
codegen_flags: <defaults>
</compile_context>

<pallas_src>
import numpy as np
import jax
import jax.numpy as jnp
from jax.experimental import pallas as pl
from jax.experimental.pallas import tpu as pltpu

_BN_EPS = 1e-5
_COMPUTE_DTYPE = jnp.bfloat16


def _round_up(v, m):
    return ((v + m - 1) // m) * m


def _pad_to(a, shape):
    widths = [(0, t - s) for s, t in zip(a.shape, shape)]
    if all(w == (0, 0) for w in widths):
        return a
    return jnp.pad(a, widths)


def _fused_student_kernel(x_ref, w1_ref, s1_ref, w2_ref, s2_ref,
                          w3_ref, s3_ref, o_ref):
    """All three (Linear -> BatchNorm1d) pairs fused.

    Weights already carry the folded BN scale; each layer is
    MXU matmul (f32 accumulate) + per-feature shift add, and the bf16
    activation flows straight into the next matmul without leaving VMEM.
    """
    h = jnp.dot(x_ref[...], w1_ref[...],
                preferred_element_type=jnp.float32) + s1_ref[...]
    h = jnp.dot(h.astype(w2_ref.dtype), w2_ref[...],
                preferred_element_type=jnp.float32) + s2_ref[...]
    h = jnp.dot(h.astype(w3_ref.dtype), w3_ref[...],
                preferred_element_type=jnp.float32) + s3_ref[...]
    o_ref[...] = h.astype(o_ref.dtype)


def fold_params(layers, compute_dtype=_COMPUTE_DTYPE):
    """One-time parameter preparation (kept OUT of the per-forward path).

    Returns per layer: transposed, BN-scale-folded, zero-padded bf16 weight
    (in_p, out_p) and f32 shift (1, out_p), plus the true (unpadded) out dim.
    Zero padding is exact for the matmul.
    """
    folded = []
    for lyr in layers:
        w = jnp.asarray(lyr["w"], jnp.float32)                      # (out, in)
        scale = (jnp.asarray(lyr["gamma"], jnp.float32)
                 / jnp.sqrt(jnp.asarray(lyr["var"], jnp.float32) + _BN_EPS))
        shift = (jnp.asarray(lyr["beta"], jnp.float32)
                 + scale * (jnp.asarray(lyr["b"], jnp.float32)
                            - jnp.asarray(lyr["mean"], jnp.float32)))
        w_folded = (w * scale[:, None]).T                           # (in, out)
        kp = _round_up(w_folded.shape[0], 128)
        np_ = _round_up(w_folded.shape[1], 128)
        folded.append({
            "w": _pad_to(w_folded, (kp, np_)).astype(compute_dtype),
            "shift": _pad_to(shift.reshape(1, -1), (1, np_)),
            "n": w_folded.shape[1],
        })
    return folded


def make_student_forward(folded, *, max_tm=512):
    """Build a jitted forward(x) from pre-folded parameters."""
    w1, w2, w3 = folded[0]["w"], folded[1]["w"], folded[2]["w"]
    s1, s2, s3 = folded[0]["shift"], folded[1]["shift"], folded[2]["shift"]
    K1, N1 = w1.shape
    N2 = w2.shape[1]
    N3 = w3.shape[1]
    n_out = folded[2]["n"]

    def forward(x):
        x = jnp.asarray(x)
        M = x.shape[0]
        # Grid only over batch; with small batches this is a single step
        # (no pipeline to speak of), larger batches tile at max_tm rows.
        Mp = _round_up(M, 8)
        tm = Mp if Mp <= max_tm else max_tm
        Mp = _round_up(Mp, tm)
        xp = _pad_to(x.astype(jnp.float32), (Mp, K1)).astype(w1.dtype)

        const = lambda i: (0, 0)          # weights/shifts stay VMEM-resident
        out = pl.pallas_call(
            _fused_student_kernel,
            grid=(Mp // tm,),
            in_specs=[
                pl.BlockSpec((tm, K1), lambda i: (i, 0)),   # activation tile
                pl.BlockSpec((K1, N1), const),
                pl.BlockSpec((1, N1), const),
                pl.BlockSpec((N1, N2), const),
                pl.BlockSpec((1, N2), const),
                pl.BlockSpec((N2, N3), const),
                pl.BlockSpec((1, N3), const),
            ],
            out_specs=pl.BlockSpec((tm, N3), lambda i: (i, 0)),
            out_shape=jax.ShapeDtypeStruct((Mp, N3), jnp.float32),
            compiler_params=pltpu.CompilerParams(
                dimension_semantics=("parallel",),
            ),
        )(xp, w1, s1, w2, s2, w3, s3)
        return out[:M, :n_out]

    return jax.jit(forward)


def _reference(x, layers):
    h = jnp.asarray(x, jnp.float32)
    for lyr in layers:
        h = h @ lyr["w"].T + lyr["b"]
        h = (h - lyr["mean"]) / jnp.sqrt(lyr["var"] + _BN_EPS)
        h = h * lyr["gamma"] + lyr["beta"]
    return h


def _make_layer(key, in_f, out_f):
    k1, k2, k3, k4, k5, k6 = jax.random.split(key, 6)
    bound = 1.0 / np.sqrt(in_f)
    return {
        "w": jax.random.uniform(k1, (out_f, in_f), jnp.float32, -bound, bound),
        "b": jax.random.uniform(k2, (out_f,), jnp.float32, -bound, bound),
        "gamma": jax.random.uniform(k3, (out_f,), jnp.float32, 0.8, 1.2),
        "beta": 0.1 * jax.random.normal(k4, (out_f,), jnp.float32),
        "mean": 0.1 * jax.random.normal(k5, (out_f,), jnp.float32),
        "var": jax.random.uniform(k6, (out_f,), jnp.float32, 0.5, 1.5),
    }


if __name__ == "__main__":
    key = jax.random.PRNGKey(0)
    kx, k1, k2, k3 = jax.random.split(key, 4)

    # Small shapes consistent with the module (in_dim -> hidden -> hidden -> out).
    batch, in_dim, hidden_dim, out_dim = 16, 384, 512, 256

    x = jax.random.normal(kx, (batch, in_dim), jnp.float32)
    layers = [
        _make_layer(k1, in_dim, hidden_dim),
        _make_layer(k2, hidden_dim, hidden_dim),
        _make_layer(k3, hidden_dim, out_dim),
    ]

    # Fold/pre-transpose parameters once, then run the fused kernel.
    folded = fold_params(layers)
    forward = make_student_forward(folded)

    out = forward(x)
    jax.block_until_ready(out)

    ref = _reference(x, layers)
    assert out.shape == (batch, out_dim)
    assert bool(jnp.allclose(out, ref, atol=5e-2, rtol=5e-2)), (
        float(jnp.max(jnp.abs(out - ref))))
    print("KERNEL_OK")
</pallas_src>

<mosaic_0001>
module attributes {stable_mosaic.version = 11 : i64} {
  func.func @_fused_student_kernel(%arg0: i32, %arg1: memref<16x384xbf16, #tpu.memory_space<vmem>>, %arg2: memref<384x512xbf16, #tpu.memory_space<vmem>>, %arg3: memref<1x512xf32, #tpu.memory_space<vmem>>, %arg4: memref<512x512xbf16, #tpu.memory_space<vmem>>, %arg5: memref<1x512xf32, #tpu.memory_space<vmem>>, %arg6: memref<512x256xbf16, #tpu.memory_space<vmem>>, %arg7: memref<1x256xf32, #tpu.memory_space<vmem>>, %arg8: memref<16x256xf32, #tpu.memory_space<vmem>>) attributes {dimension_semantics = [#tpu.dimension_semantics<parallel>], iteration_bounds = array<i64: 1>, scalar_prefetch = 0 : i64, scratch_operands = 0 : i64, tpu.core_type = #tpu.core_type<tc>, window_params = [{transform_indices = @transform_0, window_bounds = array<i64: 16, 384>}, {pipeline_mode = #tpu.pipeline_mode<synchronous>, transform_indices = @transform_1, window_bounds = array<i64: 384, 512>}, {pipeline_mode = #tpu.pipeline_mode<synchronous>, transform_indices = @transform_2, window_bounds = array<i64: 1, 512>}, {pipeline_mode = #tpu.pipeline_mode<synchronous>, transform_indices = @transform_3, window_bounds = array<i64: 512, 512>}, {pipeline_mode = #tpu.pipeline_mode<synchronous>, transform_indices = @transform_4, window_bounds = array<i64: 1, 512>}, {pipeline_mode = #tpu.pipeline_mode<synchronous>, transform_indices = @transform_5, window_bounds = array<i64: 512, 256>}, {pipeline_mode = #tpu.pipeline_mode<synchronous>, transform_indices = @transform_6, window_bounds = array<i64: 1, 256>}, {transform_indices = @transform_7, window_bounds = array<i64: 16, 256>}]} {
    %c0 = arith.constant 0 : index
    %c0_0 = arith.constant 0 : index
    %0 = vector.load %arg1[%c0, %c0_0] : memref<16x384xbf16, #tpu.memory_space<vmem>>, vector<16x384xbf16>
    %c0_1 = arith.constant 0 : index
    %c0_2 = arith.constant 0 : index
    %1 = vector.load %arg2[%c0_1, %c0_2] : memref<384x512xbf16, #tpu.memory_space<vmem>>, vector<384x512xbf16>
    %cst = arith.constant dense<0.000000e+00> : vector<16x512xf32>
    %2 = tpu.matmul %0, %1, %cst {dimension_numbers = #tpu.dot_dimension_numbers<[1], [0], [0], [1], [0, 0, 1, 1], [], []>} : vector<16x384xbf16>, vector<384x512xbf16>, vector<16x512xf32> -> vector<16x512xf32>
    %c0_3 = arith.constant 0 : index
    %c0_4 = arith.constant 0 : index
    %3 = vector.load %arg3[%c0_3, %c0_4] : memref<1x512xf32, #tpu.memory_space<vmem>>, vector<1x512xf32>
    %4 = vector.broadcast %3 : vector<1x512xf32> to vector<16x512xf32>
    %5 = arith.addf %2, %4 : vector<16x512xf32>
    %6 = arith.truncf %5 : vector<16x512xf32> to vector<16x512xbf16>
    %c0_5 = arith.constant 0 : index
    %c0_6 = arith.constant 0 : index
    %7 = vector.load %arg4[%c0_5, %c0_6] : memref<512x512xbf16, #tpu.memory_space<vmem>>, vector<512x512xbf16>
    %cst_7 = arith.constant dense<0.000000e+00> : vector<16x512xf32>
    %8 = tpu.matmul %6, %7, %cst_7 {dimension_numbers = #tpu.dot_dimension_numbers<[1], [0], [0], [1], [0, 0, 1, 1], [], []>} : vector<16x512xbf16>, vector<512x512xbf16>, vector<16x512xf32> -> vector<16x512xf32>
    %c0_8 = arith.constant 0 : index
    %c0_9 = arith.constant 0 : index
    %9 = vector.load %arg5[%c0_8, %c0_9] : memref<1x512xf32, #tpu.memory_space<vmem>>, vector<1x512xf32>
    %10 = vector.broadcast %9 : vector<1x512xf32> to vector<16x512xf32>
    %11 = arith.addf %8, %10 : vector<16x512xf32>
    %12 = arith.truncf %11 : vector<16x512xf32> to vector<16x512xbf16>
    %c0_10 = arith.constant 0 : index
    %c0_11 = arith.constant 0 : index
    %13 = vector.load %arg6[%c0_10, %c0_11] : memref<512x256xbf16, #tpu.memory_space<vmem>>, vector<512x256xbf16>
    %cst_12 = arith.constant dense<0.000000e+00> : vector<16x256xf32>
    %14 = tpu.matmul %12, %13, %cst_12 {dimension_numbers = #tpu.dot_dimension_numbers<[1], [0], [0], [1], [0, 0, 1, 1], [], []>} : vector<16x512xbf16>, vector<512x256xbf16>, vector<16x256xf32> -> vector<16x256xf32>
    %c0_13 = arith.constant 0 : index
    %c0_14 = arith.constant 0 : index
    %15 = vector.load %arg7[%c0_13, %c0_14] : memref<1x256xf32, #tpu.memory_space<vmem>>, vector<1x256xf32>
    %16 = vector.broadcast %15 : vector<1x256xf32> to vector<16x256xf32>
    %17 = arith.addf %14, %16 : vector<16x256xf32>
    %c0_15 = arith.constant 0 : index
    %c0_16 = arith.constant 0 : index
    %18 = vector.load %arg8[%c0_15, %c0_16] : memref<16x256xf32, #tpu.memory_space<vmem>>, vector<16x256xf32>
    tpu.vector_store %arg8[%c0_15, %c0_16], %17 {strides = array<i32>} : memref<16x256xf32, #tpu.memory_space<vmem>>, vector<16x256xf32>,
    return
  }
  func.func @transform_0(%arg0: i32) -> (i32, i32) {
    %c0_i32 = arith.constant 0 : i32
    %c0_i32_0 = arith.constant 0 : i32
    return %arg0, %c0_i32 : i32, i32
  }
  func.func @transform_1(%arg0: i32) -> (i32, i32) {
    %c0_i32 = arith.constant 0 : i32
    %c0_i32_0 = arith.constant 0 : i32
    %c0_i32_1 = arith.constant 0 : i32
    return %c0_i32, %c0_i32_0 : i32, i32
  }
  func.func @transform_2(%arg0: i32) -> (i32, i32) {
    %c0_i32 = arith.constant 0 : i32
    %c0_i32_0 = arith.constant 0 : i32
    %c0_i32_1 = arith.constant 0 : i32
    return %c0_i32, %c0_i32_0 : i32, i32
  }
  func.func @transform_3(%arg0: i32) -> (i32, i32) {
    %c0_i32 = arith.constant 0 : i32
    %c0_i32_0 = arith.constant 0 : i32
    %c0_i32_1 = arith.constant 0 : i32
    return %c0_i32, %c0_i32_0 : i32, i32
  }
  func.func @transform_4(%arg0: i32) -> (i32, i32) {
    %c0_i32 = arith.constant 0 : i32
    %c0_i32_0 = arith.constant 0 : i32
    %c0_i32_1 = arith.constant 0 : i32
    return %c0_i32, %c0_i32_0 : i32, i32
  }
  func.func @transform_5(%arg0: i32) -> (i32, i32) {
    %c0_i32 = arith.constant 0 : i32
    %c0_i32_0 = arith.constant 0 : i32
    %c0_i32_1 = arith.constant 0 : i32
    return %c0_i32, %c0_i32_0 : i32, i32
  }
  func.func @transform_6(%arg0: i32) -> (i32, i32) {
    %c0_i32 = arith.constant 0 : i32
    %c0_i32_0 = arith.constant 0 : i32
    %c0_i32_1 = arith.constant 0 : i32
    return %c0_i32, %c0_i32_0 : i32, i32
  }
  func.func @transform_7(%arg0: i32) -> (i32, i32) {
    %c0_i32 = arith.constant 0 : i32
    %c0_i32_0 = arith.constant 0 : i32
    return %arg0, %c0_i32 : i32, i32
  }
}

</mosaic_0001>

<llo_original>
// kernel: forward.1
$region0: #{forward.1}
  #allocation0 [shape = 'u32[]', space=smem, size = 0x4, offset = 0x4, fixed_abs, tag = 'smem constant byte address 0x4 - core index']
  #allocation1 [shape = 'u32[144,128]{1,0:T(1,128)}', space=vmem, size = 0x12000, scoped, tag = 'internal scratch']
  %s0 = inlined_call_operand.vmem [shape: bf16[16,384], index: 0, kind: input, shape index: {}]
  %s1 = inlined_call_operand.vmem [shape: bf16[384,512], index: 1, kind: input, shape index: {}]
  %s2 = inlined_call_operand.vmem [shape: f32[1,512], index: 2, kind: input, shape index: {}]
  %s3 = inlined_call_operand.vmem [shape: bf16[512,512], index: 3, kind: input, shape index: {}]
  %s4 = inlined_call_operand.vmem [shape: f32[1,512], index: 4, kind: input, shape index: {}]
  %s5 = inlined_call_operand.vmem [shape: bf16[512,256], index: 5, kind: input, shape index: {}]
  %s6 = inlined_call_operand.vmem [shape: f32[1,256], index: 6, kind: input, shape index: {}]
  %s7 = inlined_call_operand.hbm [shape: f32[16,256], index: 7, kind: output, shape index: {}]
  %s8 = sld [smem:[#allocation0]]
  $region38: #{forward.1} parent=0
    _
  %s10 = ssub.s32 1, %s8
  %s11 = scalar_select 0, %s10, %s8
  $region1: #{forward.1} parent=0
    #allocation2 [shape = 'u8[16384]{0}', space=vmem, size = 0x4000, scoped, tag = 'output window, operand 0, single buffered']
    #allocation3 [shape = 's32[1]{0}', space=sflag, size = 0x4, scoped, tag = 'scoped memory for forward.1']
    %12 = vsyncpa [#allocation3], 0
    // Predicated region
    $region2: #{forward.1} parent=1 // pred_check
      _
    $region3: #{forward.1} parent=1 // pred_check_branch
      %14 = sbr.rel (0) target = $region5
    $region4: #{forward.1} parent=1 // pred_region
      _
    $region5: #{forward.1} parent=1 // pred_fallthru
      _
    // Predicated region
    $region6: #{forward.1} parent=1 // pred_check
      _
    $region7: #{forward.1} parent=1 // pred_check_branch
      %16 = sbr.rel (0) target = $region9
    $region8: #{forward.1} parent=1 // pred_region
      _
    $region9: #{forward.1} parent=1 // pred_fallthru
      _
    // Predicated region
    $region10: #{forward.1} parent=1 // pred_check
      _
    $region11: #{forward.1} parent=1 // pred_check_branch
      %18 = sbr.rel (0) target = $region13
    $region12: #{forward.1} parent=1 // pred_region
      _
    $region13: #{forward.1} parent=1 // pred_fallthru
      _
    // Predicated region
    $region14: #{forward.1} parent=1 // pred_check
      _
    $region15: #{forward.1} parent=1 // pred_check_branch
      %20 = sbr.rel (0) target = $region17
    $region16: #{forward.1} parent=1 // pred_region
      _
    $region17: #{forward.1} parent=1 // pred_fallthru
      _
    // Predicated region
    $region18: #{forward.1} parent=1 // pred_check
      _
    $region19: #{forward.1} parent=1 // pred_check_branch
      %22 = sbr.rel (0) target = $region21
    $region20: #{forward.1} parent=1 // pred_region
      _
    $region21: #{forward.1} parent=1 // pred_fallthru
      _
    // Predicated region
    $region22: #{forward.1} parent=1 // pred_check
      _
    $region23: #{forward.1} parent=1 // pred_check_branch
      %24 = sbr.rel (0) target = $region25
    $region24: #{forward.1} parent=1 // pred_region
      _
    $region25: #{forward.1} parent=1 // pred_fallthru
      _
    // Predicated region
    $region26: #{forward.1} parent=1 // pred_check
      _
    $region27: #{forward.1} parent=1 // pred_check_branch
      %26 = sbr.rel (0) target = $region29
    $region28: #{forward.1} parent=1 // pred_region
      _
    $region29: #{forward.1} parent=1 // pred_fallthru
      _
    %v28 = vld [vmem:[%s0] sm:$0xff]
    %v29 = vld [vmem:[%s0 + $0x8] sm:$0xf]
    %v30 = vld [vmem:[%s0 + $0xc] sm:$0xff]
    %v31 = vld [vmem:[%s0 + $0x14] sm:$0xf]
    %v32 = vld [vmem:[%s1] sm:$0xff]
    %v33 = vld [vmem:[%s1 + $0x8] sm:$0xff]
    %v34 = vld [vmem:[%s1 + $0x10] sm:$0xff]
    %v35 = vld [vmem:[%s1 + $0x18] sm:$0xff]
    %v36 = vld [vmem:[%s1 + $0x20] sm:$0xff]
    %v37 = vld [vmem:[%s1 + $0x28] sm:$0xff]
    %v38 = vld [vmem:[%s1 + $0x30] sm:$0xff]
    %v39 = vld [vmem:[%s1 + $0x38] sm:$0xff]
    %v40 = vld [vmem:[%s1 + $0x40] sm:$0xff]
    %v41 = vld [vmem:[%s1 + $0x48] sm:$0xff]
    %v42 = vld [vmem:[%s1 + $0x50] sm:$0xff]
    %v43 = vld [vmem:[%s1 + $0x58] sm:$0xff]
    %v44 = vld [vmem:[%s1 + $0x60] sm:$0xff]
    %v45 = vld [vmem:[%s1 + $0x68] sm:$0xff]
    %v46 = vld [vmem:[%s1 + $0x70] sm:$0xff]
    %v47 = vld [vmem:[%s1 + $0x78] sm:$0xff]
    %v48 = vld [vmem:[%s1 + $0x80] sm:$0xff]
    %v49 = vld [vmem:[%s1 + $0x88] sm:$0xff]
    %v50 = vld [vmem:[%s1 + $0x90] sm:$0xff]
    %v51 = vld [vmem:[%s1 + $0x98] sm:$0xff]
    %v52 = vld [vmem:[%s1 + $0xa0] sm:$0xff]
    %v53 = vld [vmem:[%s1 + $0xa8] sm:$0xff]
    %v54 = vld [vmem:[%s1 + $0xb0] sm:$0xff]
    %v55 = vld [vmem:[%s1 + $0xb8] sm:$0xff]
    %v56 = vld [vmem:[%s1 + $0xc0] sm:$0xff]
    %v57 = vld [vmem:[%s1 + $0xc8] sm:$0xff]
    %v58 = vld [vmem:[%s1 + $0xd0] sm:$0xff]
    %v59 = vld [vmem:[%s1 + $0xd8] sm:$0xff]
    %v60 = vld [vmem:[%s1 + $0xe0] sm:$0xff]
    %v61 = vld [vmem:[%s1 + $0xe8] sm:$0xff]
    %v62 = vld [vmem:[%s1 + $0xf0] sm:$0xff]
    %v63 = vld [vmem:[%s1 + $0xf8] sm:$0xff]
    %v64 = vld [vmem:[%s1 + $0x100] sm:$0xff]
    %v65 = vld [vmem:[%s1 + $0x108] sm:$0xff]
    %v66 = vld [vmem:[%s1 + $0x110] sm:$0xff]
    %v67 = vld [vmem:[%s1 + $0x118] sm:$0xff]
    %v68 = vld [vmem:[%s1 + $0x120] sm:$0xff]
    %v69 = vld [vmem:[%s1 + $0x128] sm:$0xff]
    %v70 = vld [vmem:[%s1 + $0x130] sm:$0xff]
    %v71 = vld [vmem:[%s1 + $0x138] sm:$0xff]
    %v72 = vld [vmem:[%s1 + $0x140] sm:$0xff]
    %v73 = vld [vmem:[%s1 + $0x148] sm:$0xff]
    %v74 = vld [vmem:[%s1 + $0x150] sm:$0xff]
    %v75 = vld [vmem:[%s1 + $0x158] sm:$0xff]
    %v76 = vld [vmem:[%s1 + $0x160] sm:$0xff]
    %v77 = vld [vmem:[%s1 + $0x168] sm:$0xff]
    %v78 = vld [vmem:[%s1 + $0x170] sm:$0xff]
    %v79 = vld [vmem:[%s1 + $0x178] sm:$0xff]
    %v80 = vld [vmem:[%s1 + $0x180] sm:$0xff]
    %v81 = vld [vmem:[%s1 + $0x188] sm:$0xff]
    %v82 = vld [vmem:[%s1 + $0x190] sm:$0xff]
    %v83 = vld [vmem:[%s1 + $0x198] sm:$0xff]
    %v84 = vld [vmem:[%s1 + $0x1a0] sm:$0xff]
    %v85 = vld [vmem:[%s1 + $0x1a8] sm:$0xff]
    %v86 = vld [vmem:[%s1 + $0x1b0] sm:$0xff]
    %v87 = vld [vmem:[%s1 + $0x1b8] sm:$0xff]
    %v88 = vld [vmem:[%s1 + $0x1c0] sm:$0xff]
    %v89 = vld [vmem:[%s1 + $0x1c8] sm:$0xff]
    %v90 = vld [vmem:[%s1 + $0x1d0] sm:$0xff]
    %v91 = vld [vmem:[%s1 + $0x1d8] sm:$0xff]
    %v92 = vld [vmem:[%s1 + $0x1e0] sm:$0xff]
    %v93 = vld [vmem:[%s1 + $0x1e8] sm:$0xff]
    %v94 = vld [vmem:[%s1 + $0x1f0] sm:$0xff]
    %v95 = vld [vmem:[%s1 + $0x1f8] sm:$0xff]
    %v96 = vld [vmem:[%s1 + $0x200] sm:$0xff]
    %v97 = vld [vmem:[%s1 + $0x208] sm:$0xff]
    %v98 = vld [vmem:[%s1 + $0x210] sm:$0xff]
    %v99 = vld [vmem:[%s1 + $0x218] sm:$0xff]
    %v100 = vld [vmem:[%s1 + $0x220] sm:$0xff]
    %v101 = vld [vmem:[%s1 + $0x228] sm:$0xff]
    %v102 = vld [vmem:[%s1 + $0x230] sm:$0xff]
    %v103 = vld [vmem:[%s1 + $0x238] sm:$0xff]
    %v104 = vld [vmem:[%s1 + $0x240] sm:$0xff]
    %v105 = vld [vmem:[%s1 + $0x248] sm:$0xff]
    %v106 = vld [vmem:[%s1 + $0x250] sm:$0xff]
    %v107 = vld [vmem:[%s1 + $0x258] sm:$0xff]
    %v108 = vld [vmem:[%s1 + $0x260] sm:$0xff]
    %v109 = vld [vmem:[%s1 + $0x268] sm:$0xff]
    %v110 = vld [vmem:[%s1 + $0x270] sm:$0xff]
    %v111 = vld [vmem:[%s1 + $0x278] sm:$0xff]
    %v112 = vld [vmem:[%s1 + $0x280] sm:$0xff]
    %v113 = vld [vmem:[%s1 + $0x288] sm:$0xff]
    %v114 = vld [vmem:[%s1 + $0x290] sm:$0xff]
    %v115 = vld [vmem:[%s1 + $0x298] sm:$0xff]
    %v116 = vld [vmem:[%s1 + $0x2a0] sm:$0xff]
    %v117 = vld [vmem:[%s1 + $0x2a8] sm:$0xff]
    %v118 = vld [vmem:[%s1 + $0x2b0] sm:$0xff]
    %v119 = vld [vmem:[%s1 + $0x2b8] sm:$0xff]
    %v120 = vld [vmem:[%s1 + $0x2c0] sm:$0xff]
    %v121 = vld [vmem:[%s1 + $0x2c8] sm:$0xff]
    %v122 = vld [vmem:[%s1 + $0x2d0] sm:$0xff]
    %v123 = vld [vmem:[%s1 + $0x2d8] sm:$0xff]
    %v124 = vld [vmem:[%s1 + $0x2e0] sm:$0xff]
    %v125 = vld [vmem:[%s1 + $0x2e8] sm:$0xff]
    %v126 = vld [vmem:[%s1 + $0x2f0] sm:$0xff]
    %v127 = vld [vmem:[%s1 + $0x2f8] sm:$0xff]
    %v128 = vld [vmem:[%s2] sm:$0xf]
    %v130 = vlaneseq
    %v131 = vshrl.u32 %v130, 7
    %v132 = vsub.s32 0, %v131
    %v133 = vrot.slane %v128, %v132
    %v134 = vlaneseq
    %v135 = vshrl.u32 %v134, 7
    %v136 = vsub.s32 1, %v135
    %v137 = vrot.slane %v128, %v136
    %v138 = vlaneseq
    %v139 = vshrl.u32 %v138, 7
    %v140 = vsub.s32 2, %v139
    %v141 = vrot.slane %v128, %v140
    %v142 = vlaneseq
    %v143 = vshrl.u32 %v142, 7
    %v144 = vsub.s32 3, %v143
    %v145 = vrot.slane %v128, %v144
    %v154 = vunpack.c.l.b16 %v28
    %v155 = vunpack.c.h.b16 %v28
    %v156 = vunpack.c.l.b16 %v29
    %v157 = vunpack.c.l.b16 %v30
    %v158 = vunpack.c.h.b16 %v30
    %v159 = vunpack.c.l.b16 %v31
    %v160 = vpack.c.b16 %v157, %v154
    %v161 = vpack.c.b16 %v158, %v155
    %v162 = vpack.c.b16 %v159, %v156
    %v262 = vunpack.c.l.b16 %v32
    %v263 = vunpack.c.h.b16 %v32
    %v264 = vunpack.c.l.b16 %v33
    %v265 = vunpack.c.h.b16 %v33
    %v266 = vunpack.c.l.b16 %v34
    %v267 = vunpack.c.h.b16 %v34
    %v268 = vunpack.c.l.b16 %v35
    %v269 = vunpack.c.h.b16 %v35
    %v270 = vunpack.c.l.b16 %v36
    %v271 = vunpack.c.h.b16 %v36
    %v272 = vunpack.c.l.b16 %v37
    %v273 = vunpack.c.h.b16 %v37
    %v274 = vunpack.c.l.b16 %v38
    %v275 = vunpack.c.h.b16 %v38
    %v276 = vunpack.c.l.b16 %v39
    %v277 = vunpack.c.h.b16 %v39
    %v278 = vunpack.c.l.b16 %v40
    %v279 = vunpack.c.h.b16 %v40
    %v280 = vunpack.c.l.b16 %v41
    %v281 = vunpack.c.h.b16 %v41
    %v282 = vunpack.c.l.b16 %v42
    %v283 = vunpack.c.h.b16 %v42
    %v284 = vunpack.c.l.b16 %v43
    %v285 = vunpack.c.h.b16 %v43
    %v286 = vunpack.c.l.b16 %v44
    %v287 = vunpack.c.h.b16 %v44
    %v288 = vunpack.c.l.b16 %v45
    %v289 = vunpack.c.h.b16 %v45
    %v290 = vunpack.c.l.b16 %v46
    %v291 = vunpack.c.h.b16 %v46
    %v292 = vunpack.c.l.b16 %v47
    %v293 = vunpack.c.h.b16 %v47
    %v294 = vunpack.c.l.b16 %v48
    %v295 = vunpack.c.h.b16 %v48
    %v296 = vunpack.c.l.b16 %v49
    %v297 = vunpack.c.h.b16 %v49
    %v298 = vunpack.c.l.b16 %v50
    %v299 = vunpack.c.h.b16 %v50
    %v300 = vunpack.c.l.b16 %v51
    %v301 = vunpack.c.h.b16 %v51
    %v302 = vunpack.c.l.b16 %v52
    %v303 = vunpack.c.h.b16 %v52
    %v304 = vunpack.c.l.b16 %v53
    %v305 = vunpack.c.h.b16 %v53
    %v306 = vunpack.c.l.b16 %v54
    %v307 = vunpack.c.h.b16 %v54
    %v308 = vunpack.c.l.b16 %v55
    %v309 = vunpack.c.h.b16 %v55
    %v310 = vunpack.c.l.b16 %v56
    %v311 = vunpack.c.h.b16 %v56
    %v312 = vunpack.c.l.b16 %v57
    %v313 = vunpack.c.h.b16 %v57
    %v314 = vunpack.c.l.b16 %v58
    %v315 = vunpack.c.h.b16 %v58
    %v316 = vunpack.c.l.b16 %v59
    %v317 = vunpack.c.h.b16 %v59
    %v318 = vunpack.c.l.b16 %v60
    %v319 = vunpack.c.h.b16 %v60
    %v320 = vunpack.c.l.b16 %v61
    %v321 = vunpack.c.h.b16 %v61
    %v322 = vunpack.c.l.b16 %v62
    %v323 = vunpack.c.h.b16 %v62
    %v324 = vunpack.c.l.b16 %v63
    %v325 = vunpack.c.h.b16 %v63
    %v326 = vunpack.c.l.b16 %v64
    %v327 = vunpack.c.h.b16 %v64
    %v328 = vunpack.c.l.b16 %v65
    %v329 = vunpack.c.h.b16 %v65
    %v330 = vunpack.c.l.b16 %v66
    %v331 = vunpack.c.h.b16 %v66
    %v332 = vunpack.c.l.b16 %v67
    %v333 = vunpack.c.h.b16 %v67
    %v334 = vunpack.c.l.b16 %v68
    %v335 = vunpack.c.h.b16 %v68
    %v336 = vunpack.c.l.b16 %v69
    %v337 = vunpack.c.h.b16 %v69
    %v338 = vunpack.c.l.b16 %v70
    %v339 = vunpack.c.h.b16 %v70
    %v340 = vunpack.c.l.b16 %v71
    %v341 = vunpack.c.h.b16 %v71
    %v342 = vunpack.c.l.b16 %v72
    %v343 = vunpack.c.h.b16 %v72
    %v344 = vunpack.c.l.b16 %v73
    %v345 = vunpack.c.h.b16 %v73
    %v346 = vunpack.c.l.b16 %v74
    %v347 = vunpack.c.h.b16 %v74
    %v348 = vunpack.c.l.b16 %v75
    %v349 = vunpack.c.h.b16 %v75
    %v350 = vunpack.c.l.b16 %v76
    %v351 = vunpack.c.h.b16 %v76
    %v352 = vunpack.c.l.b16 %v77
    %v353 = vunpack.c.h.b16 %v77
    %v354 = vunpack.c.l.b16 %v78
    %v355 = vunpack.c.h.b16 %v78
    %v356 = vunpack.c.l.b16 %v79
    %v357 = vunpack.c.h.b16 %v79
    %v358 = vunpack.c.l.b16 %v80
    %v359 = vunpack.c.h.b16 %v80
    %v360 = vunpack.c.l.b16 %v81
    %v361 = vunpack.c.h.b16 %v81
    %v362 = vunpack.c.l.b16 %v82
    %v363 = vunpack.c.h.b16 %v82
    %v364 = vunpack.c.l.b16 %v83
    %v365 = vunpack.c.h.b16 %v83
    %v366 = vunpack.c.l.b16 %v84
    %v367 = vunpack.c.h.b16 %v84
    %v368 = vunpack.c.l.b16 %v85
    %v369 = vunpack.c.h.b16 %v85
    %v370 = vunpack.c.l.b16 %v86
    %v371 = vunpack.c.h.b16 %v86
    %v372 = vunpack.c.l.b16 %v87
    %v373 = vunpack.c.h.b16 %v87
    %v374 = vunpack.c.l.b16 %v88
    %v375 = vunpack.c.h.b16 %v88
    %v376 = vunpack.c.l.b16 %v89
    %v377 = vunpack.c.h.b16 %v89
    %v378 = vunpack.c.l.b16 %v90
    %v379 = vunpack.c.h.b16 %v90
    %v380 = vunpack.c.l.b16 %v91
    %v381 = vunpack.c.h.b16 %v91
    %v382 = vunpack.c.l.b16 %v92
    %v383 = vunpack.c.h.b16 %v92
    %v384 = vunpack.c.l.b16 %v93
    %v385 = vunpack.c.h.b16 %v93
    %v386 = vunpack.c.l.b16 %v94
    %v387 = vunpack.c.h.b16 %v94
    %v388 = vunpack.c.l.b16 %v95
    %v389 = vunpack.c.h.b16 %v95
    %v390 = vunpack.c.l.b16 %v96
    %v391 = vunpack.c.h.b16 %v96
    %v392 = vunpack.c.l.b16 %v97
    %v393 = vunpack.c.h.b16 %v97
    %v394 = vunpack.c.l.b16 %v98
    %v395 = vunpack.c.h.b16 %v98
    %v396 = vunpack.c.l.b16 %v99
    %v397 = vunpack.c.h.b16 %v99
    %v398 = vunpack.c.l.b16 %v100
    %v399 = vunpack.c.h.b16 %v100
    %v400 = vunpack.c.l.b16 %v101
    %v401 = vunpack.c.h.b16 %v101
    %v402 = vunpack.c.l.b16 %v102
    %v403 = vunpack.c.h.b16 %v102
    %v404 = vunpack.c.l.b16 %v103
    %v405 = vunpack.c.h.b16 %v103
    %v406 = vunpack.c.l.b16 %v104
    %v407 = vunpack.c.h.b16 %v104
    %v408 = vunpack.c.l.b16 %v105
    %v409 = vunpack.c.h.b16 %v105
    %v410 = vunpack.c.l.b16 %v106
    %v411 = vunpack.c.h.b16 %v106
    %v412 = vunpack.c.l.b16 %v107
    %v413 = vunpack.c.h.b16 %v107
    %v414 = vunpack.c.l.b16 %v108
    %v415 = vunpack.c.h.b16 %v108
    %v416 = vunpack.c.l.b16 %v109
    %v417 = vunpack.c.h.b16 %v109
    %v418 = vunpack.c.l.b16 %v110
    %v419 = vunpack.c.h.b16 %v110
    %v420 = vunpack.c.l.b16 %v111
    %v421 = vunpack.c.h.b16 %v111
    %v422 = vunpack.c.l.b16 %v112
    %v423 = vunpack.c.h.b16 %v112
    %v424 = vunpack.c.l.b16 %v113
    %v425 = vunpack.c.h.b16 %v113
    %v426 = vunpack.c.l.b16 %v114
    %v427 = vunpack.c.h.b16 %v114
    %v428 = vunpack.c.l.b16 %v115
    %v429 = vunpack.c.h.b16 %v115
    %v430 = vunpack.c.l.b16 %v116
    %v431 = vunpack.c.h.b16 %v116
    %v432 = vunpack.c.l.b16 %v117
    %v433 = vunpack.c.h.b16 %v117
    %v434 = vunpack.c.l.b16 %v118
    %v435 = vunpack.c.h.b16 %v118
    %v436 = vunpack.c.l.b16 %v119
    %v437 = vunpack.c.h.b16 %v119
    %v438 = vunpack.c.l.b16 %v120
    %v439 = vunpack.c.h.b16 %v120
    %v440 = vunpack.c.l.b16 %v121
    %v441 = vunpack.c.h.b16 %v121
    %v442 = vunpack.c.l.b16 %v122
    %v443 = vunpack.c.h.b16 %v122
    %v444 = vunpack.c.l.b16 %v123
    %v445 = vunpack.c.h.b16 %v123
    %v446 = vunpack.c.l.b16 %v124
    %v447 = vunpack.c.h.b16 %v124
    %v448 = vunpack.c.l.b16 %v125
    %v449 = vunpack.c.h.b16 %v125
    %v450 = vunpack.c.l.b16 %v126
    %v451 = vunpack.c.h.b16 %v126
    %v452 = vunpack.c.l.b16 %v127
    %v453 = vunpack.c.h.b16 %v127
    %v454 = vpack.c.b16 %v266, %v262
    %v455 = vpack.c.b16 %v267, %v263
    %v456 = vpack.c.b16 %v268, %v264
    %v457 = vpack.c.b16 %v269, %v265
    %v458 = vpack.c.b16 %v274, %v270
    %v459 = vpack.c.b16 %v275, %v271
    %v460 = vpack.c.b16 %v276, %v272
    %v461 = vpack.c.b16 %v277, %v273
    %v462 = vpack.c.b16 %v282, %v278
    %v463 = vpack.c.b16 %v283, %v279
    %v464 = vpack.c.b16 %v284, %v280
    %v465 = vpack.c.b16 %v285, %v281
    %v466 = vpack.c.b16 %v290, %v286
    %v467 = vpack.c.b16 %v291, %v287
    %v468 = vpack.c.b16 %v292, %v288
    %v469 = vpack.c.b16 %v293, %v289
    %v470 = vpack.c.b16 %v298, %v294
    %v471 = vpack.c.b16 %v299, %v295
    %v472 = vpack.c.b16 %v300, %v296
    %v473 = vpack.c.b16 %v301, %v297
    %v474 = vpack.c.b16 %v306, %v302
    %v475 = vpack.c.b16 %v307, %v303
    %v476 = vpack.c.b16 %v308, %v304
    %v477 = vpack.c.b16 %v309, %v305
    %v478 = vpack.c.b16 %v314, %v310
    %v479 = vpack.c.b16 %v315, %v311
    %v480 = vpack.c.b16 %v316, %v312
    %v481 = vpack.c.b16 %v317, %v313
    %v482 = vpack.c.b16 %v322, %v318
    %v483 = vpack.c.b16 %v323, %v319
    %v484 = vpack.c.b16 %v324, %v320
    %v485 = vpack.c.b16 %v325, %v321
    %v486 = vpack.c.b16 %v330, %v326
    %v487 = vpack.c.b16 %v331, %v327
    %v488 = vpack.c.b16 %v332, %v328
    %v489 = vpack.c.b16 %v333, %v329
    %v490 = vpack.c.b16 %v338, %v334
    %v491 = vpack.c.b16 %v339, %v335
    %v492 = vpack.c.b16 %v340, %v336
    %v493 = vpack.c.b16 %v341, %v337
    %v494 = vpack.c.b16 %v346, %v342
    %v495 = vpack.c.b16 %v347, %v343
    %v496 = vpack.c.b16 %v348, %v344
    %v497 = vpack.c.b16 %v349, %v345
    %v498 = vpack.c.b16 %v354, %v350
    %v499 = vpack.c.b16 %v355, %v351
    %v500 = vpack.c.b16 %v356, %v352
    %v501 = vpack.c.b16 %v357, %v353
    %v502 = vpack.c.b16 %v362, %v358
    %v503 = vpack.c.b16 %v363, %v359
    %v504 = vpack.c.b16 %v364, %v360
    %v505 = vpack.c.b16 %v365, %v361
    %v506 = vpack.c.b16 %v370, %v366
    %v507 = vpack.c.b16 %v371, %v367
    %v508 = vpack.c.b16 %v372, %v368
    %v509 = vpack.c.b16 %v373, %v369
    %v510 = vpack.c.b16 %v378, %v374
    %v511 = vpack.c.b16 %v379, %v375
    %v512 = vpack.c.b16 %v380, %v376
    %v513 = vpack.c.b16 %v381, %v377
    %v514 = vpack.c.b16 %v386, %v382
    %v515 = vpack.c.b16 %v387, %v383
    %v516 = vpack.c.b16 %v388, %v384
    %v517 = vpack.c.b16 %v389, %v385
    %v518 = vpack.c.b16 %v394, %v390
    %v519 = vpack.c.b16 %v395, %v391
    %v520 = vpack.c.b16 %v396, %v392
    %v521 = vpack.c.b16 %v397, %v393
    %v522 = vpack.c.b16 %v402, %v398
    %v523 = vpack.c.b16 %v403, %v399
    %v524 = vpack.c.b16 %v404, %v400
    %v525 = vpack.c.b16 %v405, %v401
    %v526 = vpack.c.b16 %v410, %v406
    %v527 = vpack.c.b16 %v411, %v407
    %v528 = vpack.c.b16 %v412, %v408
    %v529 = vpack.c.b16 %v413, %v409
    %v530 = vpack.c.b16 %v418, %v414
    %v531 = vpack.c.b16 %v419, %v415
    %v532 = vpack.c.b16 %v420, %v416
    %v533 = vpack.c.b16 %v421, %v417
    %v534 = vpack.c.b16 %v426, %v422
    %v535 = vpack.c.b16 %v427, %v423
    %v536 = vpack.c.b16 %v428, %v424
    %v537 = vpack.c.b16 %v429, %v425
    %v538 = vpack.c.b16 %v434, %v430
    %v539 = vpack.c.b16 %v435, %v431
    %v540 = vpack.c.b16 %v436, %v432
    %v541 = vpack.c.b16 %v437, %v433
    %v542 = vpack.c.b16 %v442, %v438
    %v543 = vpack.c.b16 %v443, %v439
    %v544 = vpack.c.b16 %v444, %v440
    %v545 = vpack.c.b16 %v445, %v441
    %v546 = vpack.c.b16 %v450, %v446
    %v547 = vpack.c.b16 %v451, %v447
    %v548 = vpack.c.b16 %v452, %v448
    %v549 = vpack.c.b16 %v453, %v449
    %646 = vmatprep.subr.bf16.mxu0 %v455
    %647 = vmatpush1.bf16.msra.mxu0 %v454
    %648 = vmatprep.subr.bf16.mxu0 %v459
    %649 = vmatpush1.bf16.msra.mxu0 %v458
    %650 = vmatprep.subr.bf16.mxu0 %v463
    %651 = vmatpush1.bf16.msra.mxu0 %v462
    %652 = vmatprep.subr.bf16.mxu0 %v467
    %653 = vmatpush1.bf16.msra.mxu0 %v466
    %654 = vmatprep.subr.bf16.mxu0 %v471
    %655 = vmatpush1.bf16.msra.mxu0 %v470
    %656 = vmatprep.subr.bf16.mxu0 %v475
    %657 = vmatpush1.bf16.msra.mxu0 %v474
    %658 = vmatprep.subr.bf16.mxu0 %v479
    %659 = vmatpush1.bf16.msra.mxu0 %v478
    %660 = vmatprep.subr.bf16.mxu0 %v483
    %661 = vmatpush1.bf16.msra.mxu0 %v482
    %662 = vmatprep.subr.bf16.mxu0 %v487
    %663 = vmatpush1.bf16.msra.mxu0 %v486
    %664 = vmatprep.subr.bf16.mxu0 %v491
    %665 = vmatpush1.bf16.msra.mxu0 %v490
    %666 = vmatprep.subr.bf16.mxu0 %v495
    %667 = vmatpush1.bf16.msra.mxu0 %v494
    %668 = vmatprep.subr.bf16.mxu0 %v499
    %669 = vmatpush1.bf16.msra.mxu0 %v498
    %670 = vmatprep.subr.bf16.mxu0 %v503
    %671 = vmatpush1.bf16.msra.mxu0 %v502
    %672 = vmatprep.subr.bf16.mxu0 %v507
    %673 = vmatpush1.bf16.msra.mxu0 %v506
    %674 = vmatprep.subr.bf16.mxu0 %v511
    %675 = vmatpush1.bf16.msra.mxu0 %v510
    %676 = vmatprep.subr.bf16.mxu0 %v515
    %677 = vmatpush1.bf16.msra.mxu0 %v514
    %678 = vmatprep.mubr.bf16.mxu0 %v161
    %679 = vmatmul.mubr.bf16.gmra.mrb[0].mxu0 %v160
    %v680 = vpop.f32.mrb[0].mxu0
    %v681 = vadd.f32 %v133, %v680
    %v682 = vpop.f32.mrb[0].mxu0
    %v683 = vadd.f32 %v137, %v682
    %v684 = vpop.f32.mrb[0].mxu0
    %v685 = vadd.f32 %v133, %v684
    %v686 = vpop.f32.mrb[0].mxu0
    %v687 = vadd.f32 %v137, %v686
    %688 = vdwg.mxu0
    %689 = vmatprep.subr.bf16.mxu0 %v519
    %690 = vmatpush1.bf16.msra.mxu0 %v518
    %691 = vmatprep.subr.bf16.mxu0 %v523
    %692 = vmatpush1.bf16.msra.mxu0 %v522
    %693 = vmatprep.subr.bf16.mxu0 %v527
    %694 = vmatpush1.bf16.msra.mxu0 %v526
    %695 = vmatprep.subr.bf16.mxu0 %v531
    %696 = vmatpush1.bf16.msra.mxu0 %v530
    %697 = vmatprep.subr.bf16.mxu0 %v535
    %698 = vmatpush1.bf16.msra.mxu0 %v534
    %699 = vmatprep.subr.bf16.mxu0 %v539
    %700 = vmatpush1.bf16.msra.mxu0 %v538
    %701 = vmatprep.subr.bf16.mxu0 %v543
    %702 = vmatpush1.bf16.msra.mxu0 %v542
    %703 = vmatprep.subr.bf16.mxu0 %v547
    %704 = vmatpush1.bf16.msra.mxu0 %v546
    %705 = vmatprep.subr.bf16.mxu0 0
    %706 = vmatpush1.bf16.msra.mxu0 0
    %707 = vmatprep.subr.bf16.mxu0 0
    %708 = vmatpush1.bf16.msra.mxu0 0
    %709 = vmatprep.subr.bf16.mxu0 0
    %710 = vmatpush1.bf16.msra.mxu0 0
    %711 = vmatprep.subr.bf16.mxu0 0
    %712 = vmatpush1.bf16.msra.mxu0 0
    %713 = vmatprep.subr.bf16.mxu0 0
    %714 = vmatpush1.bf16.msra.mxu0 0
    %715 = vmatprep.subr.bf16.mxu0 0
    %716 = vmatpush1.bf16.msra.mxu0 0
    %717 = vmatprep.subr.bf16.mxu0 0
    %718 = vmatpush1.bf16.msra.mxu0 0
    %719 = vmatprep.subr.bf16.mxu0 0
    %720 = vmatpush1.bf16.msra.mxu0 0
    %721 = vmatprep.mubr.bf16.mxu0 0
    %722 = vmatmul.mubr.bf16.gmra.mrb[0].mxu0 %v162
    %v723 = vpop.f32.mrb[0].mxu0
    %v724 = vadd.f32 %v681, %v723
    %v725 = vpop.f32.mrb[0].mxu0
    %v726 = vadd.f32 %v683, %v725
    %v727 = vpop.f32.mrb[0].mxu0
    %v728 = vadd.f32 %v685, %v727
    %v729 = vpop.f32.mrb[0].mxu0
    %v730 = vadd.f32 %v687, %v729
    %731 = vdwg.mxu0
    %732 = vmatprep.subr.bf16.mxu0 %v457
    %733 = vmatpush1.bf16.msra.mxu0 %v456
    %734 = vmatprep.subr.bf16.mxu0 %v461
    %735 = vmatpush1.bf16.msra.mxu0 %v460
    %736 = vmatprep.subr.bf16.mxu0 %v465
    %737 = vmatpush1.bf16.msra.mxu0 %v464
    %738 = vmatprep.subr.bf16.mxu0 %v469
    %739 = vmatpush1.bf16.msra.mxu0 %v468
    %740 = vmatprep.subr.bf16.mxu0 %v473
    %741 = vmatpush1.bf16.msra.mxu0 %v472
    %742 = vmatprep.subr.bf16.mxu0 %v477
    %743 = vmatpush1.bf16.msra.mxu0 %v476
    %744 = vmatprep.subr.bf16.mxu0 %v481
    %745 = vmatpush1.bf16.msra.mxu0 %v480
    %746 = vmatprep.subr.bf16.mxu0 %v485
    %747 = vmatpush1.bf16.msra.mxu0 %v484
    %748 = vmatprep.subr.bf16.mxu0 %v489
    %749 = vmatpush1.bf16.msra.mxu0 %v488
    %750 = vmatprep.subr.bf16.mxu0 %v493
    %751 = vmatpush1.bf16.msra.mxu0 %v492
    %752 = vmatprep.subr.bf16.mxu0 %v497
    %753 = vmatpush1.bf16.msra.mxu0 %v496
    %754 = vmatprep.subr.bf16.mxu0 %v501
    %755 = vmatpush1.bf16.msra.mxu0 %v500
    %756 = vmatprep.subr.bf16.mxu0 %v505
    %757 = vmatpush1.bf16.msra.mxu0 %v504
    %758 = vmatprep.subr.bf16.mxu0 %v509
    %759 = vmatpush1.bf16.msra.mxu0 %v508
    %760 = vmatprep.subr.bf16.mxu0 %v513
    %761 = vmatpush1.bf16.msra.mxu0 %v512
    %762 = vmatprep.subr.bf16.mxu0 %v517
    %763 = vmatpush1.bf16.msra.mxu0 %v516
    %764 = vmatprep.mubr.bf16.mxu0 %v161
    %765 = vmatmul.mubr.bf16.gmra.mrb[0].mxu0 %v160
    %v766 = vpop.f32.mrb[0].mxu0
    %v767 = vadd.f32 %v141, %v766
    %v768 = vpop.f32.mrb[0].mxu0
    %v769 = vadd.f32 %v145, %v768
    %v770 = vpop.f32.mrb[0].mxu0
    %v771 = vadd.f32 %v141, %v770
    %v772 = vpop.f32.mrb[0].mxu0
    %v773 = vadd.f32 %v145, %v772
    %774 = vdwg.mxu0
    %775 = vmatprep.subr.bf16.mxu0 %v521
    %776 = vmatpush1.bf16.msra.mxu0 %v520
    %777 = vmatprep.subr.bf16.mxu0 %v525
    %778 = vmatpush1.bf16.msra.mxu0 %v524
    %779 = vmatprep.subr.bf16.mxu0 %v529
    %780 = vmatpush1.bf16.msra.mxu0 %v528
    %781 = vmatprep.subr.bf16.mxu0 %v533
    %782 = vmatpush1.bf16.msra.mxu0 %v532
    %783 = vmatprep.subr.bf16.mxu0 %v537
    %784 = vmatpush1.bf16.msra.mxu0 %v536
    %785 = vmatprep.subr.bf16.mxu0 %v541
    %786 = vmatpush1.bf16.msra.mxu0 %v540
    %787 = vmatprep.subr.bf16.mxu0 %v545
    %788 = vmatpush1.bf16.msra.mxu0 %v544
    %789 = vmatprep.subr.bf16.mxu0 %v549
    %790 = vmatpush1.bf16.msra.mxu0 %v548
    %791 = vmatprep.subr.bf16.mxu0 0
    %792 = vmatpush1.bf16.msra.mxu0 0
    %793 = vmatprep.subr.bf16.mxu0 0
    %794 = vmatpush1.bf16.msra.mxu0 0
    %795 = vmatprep.subr.bf16.mxu0 0
    %796 = vmatpush1.bf16.msra.mxu0 0
    %797 = vmatprep.subr.bf16.mxu0 0
    %798 = vmatpush1.bf16.msra.mxu0 0
    %799 = vmatprep.subr.bf16.mxu0 0
    %800 = vmatpush1.bf16.msra.mxu0 0
    %801 = vmatprep.subr.bf16.mxu0 0
    %802 = vmatpush1.bf16.msra.mxu0 0
    %803 = vmatprep.subr.bf16.mxu0 0
    %804 = vmatpush1.bf16.msra.mxu0 0
    %805 = vmatprep.subr.bf16.mxu0 0
    %806 = vmatpush1.bf16.msra.mxu0 0
    %807 = vmatprep.mubr.bf16.mxu0 0
    %808 = vmatmul.mubr.bf16.gmra.mrb[0].mxu0 %v162
    %v809 = vpop.f32.mrb[0].mxu0
    %v810 = vadd.f32 %v767, %v809
    %v811 = vpop.f32.mrb[0].mxu0
    %v812 = vadd.f32 %v769, %v811
    %v813 = vpop.f32.mrb[0].mxu0
    %v814 = vadd.f32 %v771, %v813
    %v815 = vpop.f32.mrb[0].mxu0
    %v816 = vadd.f32 %v773, %v815
    %817 = vdwg.mxu0
    %v818 = vpack.c.bf16 %v728, %v724
    %v819 = vpack.c.bf16 %v730, %v726
    %v820 = vpack.c.bf16 %v814, %v810
    %v821 = vpack.c.bf16 %v816, %v812
    %v822 = vld [vmem:[%s3] sm:$0xff]
    %v823 = vld [vmem:[%s3 + $0x8] sm:$0xff]
    %v824 = vld [vmem:[%s3 + $0x10] sm:$0xff]
    %v825 = vld [vmem:[%s3 + $0x18] sm:$0xff]
    %v826 = vld [vmem:[%s3 + $0x20] sm:$0xff]
    %v827 = vld [vmem:[%s3 + $0x28] sm:$0xff]
    %v828 = vld [vmem:[%s3 + $0x30] sm:$0xff]
    %v829 = vld [vmem:[%s3 + $0x38] sm:$0xff]
    %v830 = vld [vmem:[%s3 + $0x40] sm:$0xff]
    %v831 = vld [vmem:[%s3 + $0x48] sm:$0xff]
    %v832 = vld [vmem:[%s3 + $0x50] sm:$0xff]
    %v833 = vld [vmem:[%s3 + $0x58] sm:$0xff]
    %v834 = vld [vmem:[%s3 + $0x60] sm:$0xff]
    %v835 = vld [vmem:[%s3 + $0x68] sm:$0xff]
    %v836 = vld [vmem:[%s3 + $0x70] sm:$0xff]
    %v837 = vld [vmem:[%s3 + $0x78] sm:$0xff]
    %v838 = vld [vmem:[%s3 + $0x80] sm:$0xff]
    %v839 = vld [vmem:[%s3 + $0x88] sm:$0xff]
    %v840 = vld [vmem:[%s3 + $0x90] sm:$0xff]
    %v841 = vld [vmem:[%s3 + $0x98] sm:$0xff]
    %v842 = vld [vmem:[%s3 + $0xa0] sm:$0xff]
    %v843 = vld [vmem:[%s3 + $0xa8] sm:$0xff]
    %v844 = vld [vmem:[%s3 + $0xb0] sm:$0xff]
    %v845 = vld [vmem:[%s3 + $0xb8] sm:$0xff]
    %v846 = vld [vmem:[%s3 + $0xc0] sm:$0xff]
    %v847 = vld [vmem:[%s3 + $0xc8] sm:$0xff]
    %v848 = vld [vmem:[%s3 + $0xd0] sm:$0xff]
    %v849 = vld [vmem:[%s3 + $0xd8] sm:$0xff]
    %v850 = vld [vmem:[%s3 + $0xe0] sm:$0xff]
    %v851 = vld [vmem:[%s3 + $0xe8] sm:$0xff]
    %v852 = vld [vmem:[%s3 + $0xf0] sm:$0xff]
    %v853 = vld [vmem:[%s3 + $0xf8] sm:$0xff]
    %v854 = vld [vmem:[%s3 + $0x100] sm:$0xff]
    %v855 = vld [vmem:[%s3 + $0x108] sm:$0xff]
    %v856 = vld [vmem:[%s3 + $0x110] sm:$0xff]
    %v857 = vld [vmem:[%s3 + $0x118] sm:$0xff]
    %v858 = vld [vmem:[%s3 + $0x120] sm:$0xff]
    %v859 = vld [vmem:[%s3 + $0x128] sm:$0xff]
    %v860 = vld [vmem:[%s3 + $0x130] sm:$0xff]
    %v861 = vld [vmem:[%s3 + $0x138] sm:$0xff]
    %v862 = vld [vmem:[%s3 + $0x140] sm:$0xff]
    %v863 = vld [vmem:[%s3 + $0x148] sm:$0xff]
    %v864 = vld [vmem:[%s3 + $0x150] sm:$0xff]
    %v865 = vld [vmem:[%s3 + $0x158] sm:$0xff]
    %v866 = vld [vmem:[%s3 + $0x160] sm:$0xff]
    %v867 = vld [vmem:[%s3 + $0x168] sm:$0xff]
    %v868 = vld [vmem:[%s3 + $0x170] sm:$0xff]
    %v869 = vld [vmem:[%s3 + $0x178] sm:$0xff]
    %v870 = vld [vmem:[%s3 + $0x180] sm:$0xff]
    %v871 = vld [vmem:[%s3 + $0x188] sm:$0xff]
    %v872 = vld [vmem:[%s3 + $0x190] sm:$0xff]
    %v873 = vld [vmem:[%s3 + $0x198] sm:$0xff]
    %v874 = vld [vmem:[%s3 + $0x1a0] sm:$0xff]
    %v875 = vld [vmem:[%s3 + $0x1a8] sm:$0xff]
    %v876 = vld [vmem:[%s3 + $0x1b0] sm:$0xff]
    %v877 = vld [vmem:[%s3 + $0x1b8] sm:$0xff]
    %v878 = vld [vmem:[%s3 + $0x1c0] sm:$0xff]
    %v879 = vld [vmem:[%s3 + $0x1c8] sm:$0xff]
    %v880 = vld [vmem:[%s3 + $0x1d0] sm:$0xff]
    %v881 = vld [vmem:[%s3 + $0x1d8] sm:$0xff]
    %v882 = vld [vmem:[%s3 + $0x1e0] sm:$0xff]
    %v883 = vld [vmem:[%s3 + $0x1e8] sm:$0xff]
    %v884 = vld [vmem:[%s3 + $0x1f0] sm:$0xff]
    %v885 = vld [vmem:[%s3 + $0x1f8] sm:$0xff]
    %v886 = vld [vmem:[%s3 + $0x200] sm:$0xff]
    %v887 = vld [vmem:[%s3 + $0x208] sm:$0xff]
    %v888 = vld [vmem:[%s3 + $0x210] sm:$0xff]
    %v889 = vld [vmem:[%s3 + $0x218] sm:$0xff]
    %v890 = vld [vmem:[%s3 + $0x220] sm:$0xff]
    %v891 = vld [vmem:[%s3 + $0x228] sm:$0xff]
    %v892 = vld [vmem:[%s3 + $0x230] sm:$0xff]
    %v893 = vld [vmem:[%s3 + $0x238] sm:$0xff]
    %v894 = vld [vmem:[%s3 + $0x240] sm:$0xff]
    %v895 = vld [vmem:[%s3 + $0x248] sm:$0xff]
    %v896 = vld [vmem:[%s3 + $0x250] sm:$0xff]
    %v897 = vld [vmem:[%s3 + $0x258] sm:$0xff]
    %v898 = vld [vmem:[%s3 + $0x260] sm:$0xff]
    %v899 = vld [vmem:[%s3 + $0x268] sm:$0xff]
    %v900 = vld [vmem:[%s3 + $0x270] sm:$0xff]
    %v901 = vld [vmem:[%s3 + $0x278] sm:$0xff]
    %v902 = vld [vmem:[%s3 + $0x280] sm:$0xff]
    %v903 = vld [vmem:[%s3 + $0x288] sm:$0xff]
    %v904 = vld [vmem:[%s3 + $0x290] sm:$0xff]
    %v905 = vld [vmem:[%s3 + $0x298] sm:$0xff]
    %v906 = vld [vmem:[%s3 + $0x2a0] sm:$0xff]
    %v907 = vld [vmem:[%s3 + $0x2a8] sm:$0xff]
    %v908 = vld [vmem:[%s3 + $0x2b0] sm:$0xff]
    %v909 = vld [vmem:[%s3 + $0x2b8] sm:$0xff]
    %v910 = vld [vmem:[%s3 + $0x2c0] sm:$0xff]
    %v911 = vld [vmem:[%s3 + $0x2c8] sm:$0xff]
    %v912 = vld [vmem:[%s3 + $0x2d0] sm:$0xff]
    %v913 = vld [vmem:[%s3 + $0x2d8] sm:$0xff]
    %v914 = vld [vmem:[%s3 + $0x2e0] sm:$0xff]
    %v915 = vld [vmem:[%s3 + $0x2e8] sm:$0xff]
    %v916 = vld [vmem:[%s3 + $0x2f0] sm:$0xff]
    %v917 = vld [vmem:[%s3 + $0x2f8] sm:$0xff]
    %v918 = vld [vmem:[%s3 + $0x300] sm:$0xff]
    %v919 = vld [vmem:[%s3 + $0x308] sm:$0xff]
    %v920 = vld [vmem:[%s3 + $0x310] sm:$0xff]
    %v921 = vld [vmem:[%s3 + $0x318] sm:$0xff]
    %v922 = vld [vmem:[%s3 + $0x320] sm:$0xff]
    %v923 = vld [vmem:[%s3 + $0x328] sm:$0xff]
    %v924 = vld [vmem:[%s3 + $0x330] sm:$0xff]
    %v925 = vld [vmem:[%s3 + $0x338] sm:$0xff]
    %v926 = vld [vmem:[%s3 + $0x340] sm:$0xff]
    %v927 = vld [vmem:[%s3 + $0x348] sm:$0xff]
    %v928 = vld [vmem:[%s3 + $0x350] sm:$0xff]
    %v929 = vld [vmem:[%s3 + $0x358] sm:$0xff]
    %v930 = vld [vmem:[%s3 + $0x360] sm:$0xff]
    %v931 = vld [vmem:[%s3 + $0x368] sm:$0xff]
    %v932 = vld [vmem:[%s3 + $0x370] sm:$0xff]
    %v933 = vld [vmem:[%s3 + $0x378] sm:$0xff]
    %v934 = vld [vmem:[%s3 + $0x380] sm:$0xff]
    %v935 = vld [vmem:[%s3 + $0x388] sm:$0xff]
    %v936 = vld [vmem:[%s3 + $0x390] sm:$0xff]
    %v937 = vld [vmem:[%s3 + $0x398] sm:$0xff]
    %v938 = vld [vmem:[%s3 + $0x3a0] sm:$0xff]
    %v939 = vld [vmem:[%s3 + $0x3a8] sm:$0xff]
    %v940 = vld [vmem:[%s3 + $0x3b0] sm:$0xff]
    %v941 = vld [vmem:[%s3 + $0x3b8] sm:$0xff]
    %v942 = vld [vmem:[%s3 + $0x3c0] sm:$0xff]
    %v943 = vld [vmem:[%s3 + $0x3c8] sm:$0xff]
    %v944 = vld [vmem:[%s3 + $0x3d0] sm:$0xff]
    %v945 = vld [vmem:[%s3 + $0x3d8] sm:$0xff]
    %v946 = vld [vmem:[%s3 + $0x3e0] sm:$0xff]
    %v947 = vld [vmem:[%s3 + $0x3e8] sm:$0xff]
    %v948 = vld [vmem:[%s3 + $0x3f0] sm:$0xff]
    %v949 = vld [vmem:[%s3 + $0x3f8] sm:$0xff]
    %v950 = vld [vmem:[%s4] sm:$0xf]
    %v952 = vlaneseq
    %v953 = vshrl.u32 %v952, 7
    %v954 = vsub.s32 0, %v953
    %v955 = vrot.slane %v950, %v954
    %v956 = vlaneseq
    %v957 = vshrl.u32 %v956, 7
    %v958 = vsub.s32 1, %v957
    %v959 = vrot.slane %v950, %v958
    %v960 = vlaneseq
    %v961 = vshrl.u32 %v960, 7
    %v962 = vsub.s32 2, %v961
    %v963 = vrot.slane %v950, %v962
    %v964 = vlaneseq
    %v965 = vshrl.u32 %v964, 7
    %v966 = vsub.s32 3, %v965
    %v967 = vrot.slane %v950, %v966
    %v1100 = vunpack.c.l.b16 %v822
    %v1101 = vunpack.c.h.b16 %v822
    %v1102 = vunpack.c.l.b16 %v823
    %v1103 = vunpack.c.h.b16 %v823
    %v1104 = vunpack.c.l.b16 %v824
    %v1105 = vunpack.c.h.b16 %v824
    %v1106 = vunpack.c.l.b16 %v825
    %v1107 = vunpack.c.h.b16 %v825
    %v1108 = vunpack.c.l.b16 %v826
    %v1109 = vunpack.c.h.b16 %v826
    %v1110 = vunpack.c.l.b16 %v827
    %v1111 = vunpack.c.h.b16 %v827
    %v1112 = vunpack.c.l.b16 %v828
    %v1113 = vunpack.c.h.b16 %v828
    %v1114 = vunpack.c.l.b16 %v829
    %v1115 = vunpack.c.h.b16 %v829
    %v1116 = vunpack.c.l.b16 %v830
    %v1117 = vunpack.c.h.b16 %v830
    %v1118 = vunpack.c.l.b16 %v831
    %v1119 = vunpack.c.h.b16 %v831
    %v1120 = vunpack.c.l.b16 %v832
    %v1121 = vunpack.c.h.b16 %v832
    %v1122 = vunpack.c.l.b16 %v833
    %v1123 = vunpack.c.h.b16 %v833
    %v1124 = vunpack.c.l.b16 %v834
    %v1125 = vunpack.c.h.b16 %v834
    %v1126 = vunpack.c.l.b16 %v835
    %v1127 = vunpack.c.h.b16 %v835
    %v1128 = vunpack.c.l.b16 %v836
    %v1129 = vunpack.c.h.b16 %v836
    %v1130 = vunpack.c.l.b16 %v837
    %v1131 = vunpack.c.h.b16 %v837
    %v1132 = vunpack.c.l.b16 %v838
    %v1133 = vunpack.c.h.b16 %v838
    %v1134 = vunpack.c.l.b16 %v839
    %v1135 = vunpack.c.h.b16 %v839
    %v1136 = vunpack.c.l.b16 %v840
    %v1137 = vunpack.c.h.b16 %v840
    %v1138 = vunpack.c.l.b16 %v841
    %v1139 = vunpack.c.h.b16 %v841
    %v1140 = vunpack.c.l.b16 %v842
    %v1141 = vunpack.c.h.b16 %v842
    %v1142 = vunpack.c.l.b16 %v843
    %v1143 = vunpack.c.h.b16 %v843
    %v1144 = vunpack.c.l.b16 %v844
    %v1145 = vunpack.c.h.b16 %v844
    %v1146 = vunpack.c.l.b16 %v845
    %v1147 = vunpack.c.h.b16 %v845
    %v1148 = vunpack.c.l.b16 %v846
    %v1149 = vunpack.c.h.b16 %v846
    %v1150 = vunpack.c.l.b16 %v847
    %v1151 = vunpack.c.h.b16 %v847
    %v1152 = vunpack.c.l.b16 %v848
    %v1153 = vunpack.c.h.b16 %v848
    %v1154 = vunpack.c.l.b16 %v849
    %v1155 = vunpack.c.h.b16 %v849
    %v1156 = vunpack.c.l.b16 %v850
    %v1157 = vunpack.c.h.b16 %v850
    %v1158 = vunpack.c.l.b16 %v851
    %v1159 = vunpack.c.h.b16 %v851
    %v1160 = vunpack.c.l.b16 %v852
    %v1161 = vunpack.c.h.b16 %v852
    %v1162 = vunpack.c.l.b16 %v853
    %v1163 = vunpack.c.h.b16 %v853
    %v1164 = vunpack.c.l.b16 %v854
    %v1165 = vunpack.c.h.b16 %v854
    %v1166 = vunpack.c.l.b16 %v855
    %v1167 = vunpack.c.h.b16 %v855
    %v1168 = vunpack.c.l.b16 %v856
    %v1169 = vunpack.c.h.b16 %v856
    %v1170 = vunpack.c.l.b16 %v857
    %v1171 = vunpack.c.h.b16 %v857
    %v1172 = vunpack.c.l.b16 %v858
    %v1173 = vunpack.c.h.b16 %v858
    %v1174 = vunpack.c.l.b16 %v859
    %v1175 = vunpack.c.h.b16 %v859
    %v1176 = vunpack.c.l.b16 %v860
    %v1177 = vunpack.c.h.b16 %v860
    %v1178 = vunpack.c.l.b16 %v861
    %v1179 = vunpack.c.h.b16 %v861
    %v1180 = vunpack.c.l.b16 %v862
    %v1181 = vunpack.c.h.b16 %v862
    %v1182 = vunpack.c.l.b16 %v863
    %v1183 = vunpack.c.h.b16 %v863
    %v1184 = vunpack.c.l.b16 %v864
    %v1185 = vunpack.c.h.b16 %v864
    %v1186 = vunpack.c.l.b16 %v865
    %v1187 = vunpack.c.h.b16 %v865
    %v1188 = vunpack.c.l.b16 %v866
    %v1189 = vunpack.c.h.b16 %v866
    %v1190 = vunpack.c.l.b16 %v867
    %v1191 = vunpack.c.h.b16 %v867
    %v1192 = vunpack.c.l.b16 %v868
    %v1193 = vunpack.c.h.b16 %v868
    %v1194 = vunpack.c.l.b16 %v869
    %v1195 = vunpack.c.h.b16 %v869
    %v1196 = vunpack.c.l.b16 %v870
    %v1197 = vunpack.c.h.b16 %v870
    %v1198 = vunpack.c.l.b16 %v871
    %v1199 = vunpack.c.h.b16 %v871
    %v1200 = vunpack.c.l.b16 %v872
    %v1201 = vunpack.c.h.b16 %v872
    %v1202 = vunpack.c.l.b16 %v873
    %v1203 = vunpack.c.h.b16 %v873
    %v1204 = vunpack.c.l.b16 %v874
    %v1205 = vunpack.c.h.b16 %v874
    %v1206 = vunpack.c.l.b16 %v875
    %v1207 = vunpack.c.h.b16 %v875
    %v1208 = vunpack.c.l.b16 %v876
    %v1209 = vunpack.c.h.b16 %v876
    %v1210 = vunpack.c.l.b16 %v877
    %v1211 = vunpack.c.h.b16 %v877
    %v1212 = vunpack.c.l.b16 %v878
    %v1213 = vunpack.c.h.b16 %v878
    %v1214 = vunpack.c.l.b16 %v879
    %v1215 = vunpack.c.h.b16 %v879
    %v1216 = vunpack.c.l.b16 %v880
    %v1217 = vunpack.c.h.b16 %v880
    %v1218 = vunpack.c.l.b16 %v881
    %v1219 = vunpack.c.h.b16 %v881
    %v1220 = vunpack.c.l.b16 %v882
    %v1221 = vunpack.c.h.b16 %v882
    %v1222 = vunpack.c.l.b16 %v883
    %v1223 = vunpack.c.h.b16 %v883
    %v1224 = vunpack.c.l.b16 %v884
    %v1225 = vunpack.c.h.b16 %v884
    %v1226 = vunpack.c.l.b16 %v885
    %v1227 = vunpack.c.h.b16 %v885
    %v1228 = vunpack.c.l.b16 %v886
    %v1229 = vunpack.c.h.b16 %v886
    %v1230 = vunpack.c.l.b16 %v887
    %v1231 = vunpack.c.h.b16 %v887
    %v1232 = vunpack.c.l.b16 %v888
    %v1233 = vunpack.c.h.b16 %v888
    %v1234 = vunpack.c.l.b16 %v889
    %v1235 = vunpack.c.h.b16 %v889
    %v1236 = vunpack.c.l.b16 %v890
    %v1237 = vunpack.c.h.b16 %v890
    %v1238 = vunpack.c.l.b16 %v891
    %v1239 = vunpack.c.h.b16 %v891
    %v1240 = vunpack.c.l.b16 %v892
    %v1241 = vunpack.c.h.b16 %v892
    %v1242 = vunpack.c.l.b16 %v893
    %v1243 = vunpack.c.h.b16 %v893
    %v1244 = vunpack.c.l.b16 %v894
    %v1245 = vunpack.c.h.b16 %v894
    %v1246 = vunpack.c.l.b16 %v895
    %v1247 = vunpack.c.h.b16 %v895
    %v1248 = vunpack.c.l.b16 %v896
    %v1249 = vunpack.c.h.b16 %v896
    %v1250 = vunpack.c.l.b16 %v897
    %v1251 = vunpack.c.h.b16 %v897
    %v1252 = vunpack.c.l.b16 %v898
    %v1253 = vunpack.c.h.b16 %v898
    %v1254 = vunpack.c.l.b16 %v899
    %v1255 = vunpack.c.h.b16 %v899
    %v1256 = vunpack.c.l.b16 %v900
    %v1257 = vunpack.c.h.b16 %v900
    %v1258 = vunpack.c.l.b16 %v901
    %v1259 = vunpack.c.h.b16 %v901
    %v1260 = vunpack.c.l.b16 %v902
    %v1261 = vunpack.c.h.b16 %v902
    %v1262 = vunpack.c.l.b16 %v903
    %v1263 = vunpack.c.h.b16 %v903
    %v1264 = vunpack.c.l.b16 %v904
    %v1265 = vunpack.c.h.b16 %v904
    %v1266 = vunpack.c.l.b16 %v905
    %v1267 = vunpack.c.h.b16 %v905
    %v1268 = vunpack.c.l.b16 %v906
    %v1269 = vunpack.c.h.b16 %v906
    %v1270 = vunpack.c.l.b16 %v907
    %v1271 = vunpack.c.h.b16 %v907
    %v1272 = vunpack.c.l.b16 %v908
    %v1273 = vunpack.c.h.b16 %v908
    %v1274 = vunpack.c.l.b16 %v909
    %v1275 = vunpack.c.h.b16 %v909
    %v1276 = vunpack.c.l.b16 %v910
    %v1277 = vunpack.c.h.b16 %v910
    %v1278 = vunpack.c.l.b16 %v911
    %v1279 = vunpack.c.h.b16 %v911
    %v1280 = vunpack.c.l.b16 %v912
    %v1281 = vunpack.c.h.b16 %v912
    %v1282 = vunpack.c.l.b16 %v913
    %v1283 = vunpack.c.h.b16 %v913
    %v1284 = vunpack.c.l.b16 %v914
    %v1285 = vunpack.c.h.b16 %v914
    %v1286 = vunpack.c.l.b16 %v915
    %v1287 = vunpack.c.h.b16 %v915
    %v1288 = vunpack.c.l.b16 %v916
    %v1289 = vunpack.c.h.b16 %v916
    %v1290 = vunpack.c.l.b16 %v917
    %v1291 = vunpack.c.h.b16 %v917
    %v1292 = vunpack.c.l.b16 %v918
    %v1293 = vunpack.c.h.b16 %v918
    %v1294 = vunpack.c.l.b16 %v919
    %v1295 = vunpack.c.h.b16 %v919
    %v1296 = vunpack.c.l.b16 %v920
    %v1297 = vunpack.c.h.b16 %v920
    %v1298 = vunpack.c.l.b16 %v921
    %v1299 = vunpack.c.h.b16 %v921
    %v1300 = vunpack.c.l.b16 %v922
    %v1301 = vunpack.c.h.b16 %v922
    %v1302 = vunpack.c.l.b16 %v923
    %v1303 = vunpack.c.h.b16 %v923
    %v1304 = vunpack.c.l.b16 %v924
    %v1305 = vunpack.c.h.b16 %v924
    %v1306 = vunpack.c.l.b16 %v925
    %v1307 = vunpack.c.h.b16 %v925
    %v1308 = vunpack.c.l.b16 %v926
    %v1309 = vunpack.c.h.b16 %v926
    %v1310 = vunpack.c.l.b16 %v927
    %v1311 = vunpack.c.h.b16 %v927
    %v1312 = vunpack.c.l.b16 %v928
    %v1313 = vunpack.c.h.b16 %v928
    %v1314 = vunpack.c.l.b16 %v929
    %v1315 = vunpack.c.h.b16 %v929
    %v1316 = vunpack.c.l.b16 %v930
    %v1317 = vunpack.c.h.b16 %v930
    %v1318 = vunpack.c.l.b16 %v931
    %v1319 = vunpack.c.h.b16 %v931
    %v1320 = vunpack.c.l.b16 %v932
    %v1321 = vunpack.c.h.b16 %v932
    %v1322 = vunpack.c.l.b16 %v933
    %v1323 = vunpack.c.h.b16 %v933
    %v1324 = vunpack.c.l.b16 %v934
    %v1325 = vunpack.c.h.b16 %v934
    %v1326 = vunpack.c.l.b16 %v935
    %v1327 = vunpack.c.h.b16 %v935
    %v1328 = vunpack.c.l.b16 %v936
    %v1329 = vunpack.c.h.b16 %v936
    %v1330 = vunpack.c.l.b16 %v937
    %v1331 = vunpack.c.h.b16 %v937
    %v1332 = vunpack.c.l.b16 %v938
    %v1333 = vunpack.c.h.b16 %v938
    %v1334 = vunpack.c.l.b16 %v939
    %v1335 = vunpack.c.h.b16 %v939
    %v1336 = vunpack.c.l.b16 %v940
    %v1337 = vunpack.c.h.b16 %v940
    %v1338 = vunpack.c.l.b16 %v941
    %v1339 = vunpack.c.h.b16 %v941
    %v1340 = vunpack.c.l.b16 %v942
    %v1341 = vunpack.c.h.b16 %v942
    %v1342 = vunpack.c.l.b16 %v943
    %v1343 = vunpack.c.h.b16 %v943
    %v1344 = vunpack.c.l.b16 %v944
    %v1345 = vunpack.c.h.b16 %v944
    %v1346 = vunpack.c.l.b16 %v945
    %v1347 = vunpack.c.h.b16 %v945
    %v1348 = vunpack.c.l.b16 %v946
    %v1349 = vunpack.c.h.b16 %v946
    %v1350 = vunpack.c.l.b16 %v947
    %v1351 = vunpack.c.h.b16 %v947
    %v1352 = vunpack.c.l.b16 %v948
    %v1353 = vunpack.c.h.b16 %v948
    %v1354 = vunpack.c.l.b16 %v949
    %v1355 = vunpack.c.h.b16 %v949
    %v1356 = vpack.c.b16 %v1104, %v1100
    %v1357 = vpack.c.b16 %v1105, %v1101
    %v1358 = vpack.c.b16 %v1106, %v1102
    %v1359 = vpack.c.b16 %v1107, %v1103
    %v1360 = vpack.c.b16 %v1112, %v1108
    %v1361 = vpack.c.b16 %v1113, %v1109
    %v1362 = vpack.c.b16 %v1114, %v1110
    %v1363 = vpack.c.b16 %v1115, %v1111
    %v1364 = vpack.c.b16 %v1120, %v1116
    %v1365 = vpack.c.b16 %v1121, %v1117
    %v1366 = vpack.c.b16 %v1122, %v1118
    %v1367 = vpack.c.b16 %v1123, %v1119
    %v1368 = vpack.c.b16 %v1128, %v1124
    %v1369 = vpack.c.b16 %v1129, %v1125
    %v1370 = vpack.c.b16 %v1130, %v1126
    %v1371 = vpack.c.b16 %v1131, %v1127
    %v1372 = vpack.c.b16 %v1136, %v1132
    %v1373 = vpack.c.b16 %v1137, %v1133
    %v1374 = vpack.c.b16 %v1138, %v1134
    %v1375 = vpack.c.b16 %v1139, %v1135
    %v1376 = vpack.c.b16 %v1144, %v1140
    %v1377 = vpack.c.b16 %v1145, %v1141
    %v1378 = vpack.c.b16 %v1146, %v1142
    %v1379 = vpack.c.b16 %v1147, %v1143
    %v1380 = vpack.c.b16 %v1152, %v1148
    %v1381 = vpack.c.b16 %v1153, %v1149
    %v1382 = vpack.c.b16 %v1154, %v1150
    %v1383 = vpack.c.b16 %v1155, %v1151
    %v1384 = vpack.c.b16 %v1160, %v1156
    %v1385 = vpack.c.b16 %v1161, %v1157
    %v1386 = vpack.c.b16 %v1162, %v1158
    %v1387 = vpack.c.b16 %v1163, %v1159
    %v1388 = vpack.c.b16 %v1168, %v1164
    %v1389 = vpack.c.b16 %v1169, %v1165
    %v1390 = vpack.c.b16 %v1170, %v1166
    %v1391 = vpack.c.b16 %v1171, %v1167
    %v1392 = vpack.c.b16 %v1176, %v1172
    %v1393 = vpack.c.b16 %v1177, %v1173
    %v1394 = vpack.c.b16 %v1178, %v1174
    %v1395 = vpack.c.b16 %v1179, %v1175
    %v1396 = vpack.c.b16 %v1184, %v1180
    %v1397 = vpack.c.b16 %v1185, %v1181
    %v1398 = vpack.c.b16 %v1186, %v1182
    %v1399 = vpack.c.b16 %v1187, %v1183
    %v1400 = vpack.c.b16 %v1192, %v1188
    %v1401 = vpack.c.b16 %v1193, %v1189
    %v1402 = vpack.c.b16 %v1194, %v1190
    %v1403 = vpack.c.b16 %v1195, %v1191
    %v1404 = vpack.c.b16 %v1200, %v1196
    %v1405 = vpack.c.b16 %v1201, %v1197
    %v1406 = vpack.c.b16 %v1202, %v1198
    %v1407 = vpack.c.b16 %v1203, %v1199
    %v1408 = vpack.c.b16 %v1208, %v1204
    %v1409 = vpack.c.b16 %v1209, %v1205
    %v1410 = vpack.c.b16 %v1210, %v1206
    %v1411 = vpack.c.b16 %v1211, %v1207
    %v1412 = vpack.c.b16 %v1216, %v1212
    %v1413 = vpack.c.b16 %v1217, %v1213
    %v1414 = vpack.c.b16 %v1218, %v1214
    %v1415 = vpack.c.b16 %v1219, %v1215
    %v1416 = vpack.c.b16 %v1224, %v1220
    %v1417 = vpack.c.b16 %v1225, %v1221
    %v1418 = vpack.c.b16 %v1226, %v1222
    %v1419 = vpack.c.b16 %v1227, %v1223
    %v1420 = vpack.c.b16 %v1232, %v1228
    %v1421 = vpack.c.b16 %v1233, %v1229
    %v1422 = vpack.c.b16 %v1234, %v1230
    %v1423 = vpack.c.b16 %v1235, %v1231
    %v1424 = vpack.c.b16 %v1240, %v1236
    %v1425 = vpack.c.b16 %v1241, %v1237
    %v1426 = vpack.c.b16 %v1242, %v1238
    %v1427 = vpack.c.b16 %v1243, %v1239
    %v1428 = vpack.c.b16 %v1248, %v1244
    %v1429 = vpack.c.b16 %v1249, %v1245
    %v1430 = vpack.c.b16 %v1250, %v1246
    %v1431 = vpack.c.b16 %v1251, %v1247
    %v1432 = vpack.c.b16 %v1256, %v1252
    %v1433 = vpack.c.b16 %v1257, %v1253
    %v1434 = vpack.c.b16 %v1258, %v1254
    %v1435 = vpack.c.b16 %v1259, %v1255
    %v1436 = vpack.c.b16 %v1264, %v1260
    %v1437 = vpack.c.b16 %v1265, %v1261
    %v1438 = vpack.c.b16 %v1266, %v1262
    %v1439 = vpack.c.b16 %v1267, %v1263
    %v1440 = vpack.c.b16 %v1272, %v1268
    %v1441 = vpack.c.b16 %v1273, %v1269
    %v1442 = vpack.c.b16 %v1274, %v1270
    %v1443 = vpack.c.b16 %v1275, %v1271
    %v1444 = vpack.c.b16 %v1280, %v1276
    %v1445 = vpack.c.b16 %v1281, %v1277
    %v1446 = vpack.c.b16 %v1282, %v1278
    %v1447 = vpack.c.b16 %v1283, %v1279
    %v1448 = vpack.c.b16 %v1288, %v1284
    %v1449 = vpack.c.b16 %v1289, %v1285
    %v1450 = vpack.c.b16 %v1290, %v1286
    %v1451 = vpack.c.b16 %v1291, %v1287
    %v1452 = vpack.c.b16 %v1296, %v1292
    %v1453 = vpack.c.b16 %v1297, %v1293
    %v1454 = vpack.c.b16 %v1298, %v1294
    %v1455 = vpack.c.b16 %v1299, %v1295
    %v1456 = vpack.c.b16 %v1304, %v1300
    %v1457 = vpack.c.b16 %v1305, %v1301
    %v1458 = vpack.c.b16 %v1306, %v1302
    %v1459 = vpack.c.b16 %v1307, %v1303
    %v1460 = vpack.c.b16 %v1312, %v1308
    %v1461 = vpack.c.b16 %v1313, %v1309
    %v1462 = vpack.c.b16 %v1314, %v1310
    %v1463 = vpack.c.b16 %v1315, %v1311
    %v1464 = vpack.c.b16 %v1320, %v1316
    %v1465 = vpack.c.b16 %v1321, %v1317
    %v1466 = vpack.c.b16 %v1322, %v1318
    %v1467 = vpack.c.b16 %v1323, %v1319
    %v1468 = vpack.c.b16 %v1328, %v1324
    %v1469 = vpack.c.b16 %v1329, %v1325
    %v1470 = vpack.c.b16 %v1330, %v1326
    %v1471 = vpack.c.b16 %v1331, %v1327
    %v1472 = vpack.c.b16 %v1336, %v1332
    %v1473 = vpack.c.b16 %v1337, %v1333
    %v1474 = vpack.c.b16 %v1338, %v1334
    %v1475 = vpack.c.b16 %v1339, %v1335
    %v1476 = vpack.c.b16 %v1344, %v1340
    %v1477 = vpack.c.b16 %v1345, %v1341
    %v1478 = vpack.c.b16 %v1346, %v1342
    %v1479 = vpack.c.b16 %v1347, %v1343
    %v1480 = vpack.c.b16 %v1352, %v1348
    %v1481 = vpack.c.b16 %v1353, %v1349
    %v1482 = vpack.c.b16 %v1354, %v1350
    %v1483 = vpack.c.b16 %v1355, %v1351
    %1612 = vmatprep.subr.bf16.mxu0 %v1357
    %1613 = vmatpush1.bf16.msra.mxu0 %v1356
    %1614 = vmatprep.subr.bf16.mxu0 %v1361
    %1615 = vmatpush1.bf16.msra.mxu0 %v1360
    %1616 = vmatprep.subr.bf16.mxu0 %v1365
    %1617 = vmatpush1.bf16.msra.mxu0 %v1364
    %1618 = vmatprep.subr.bf16.mxu0 %v1369
    %1619 = vmatpush1.bf16.msra.mxu0 %v1368
    %1620 = vmatprep.subr.bf16.mxu0 %v1373
    %1621 = vmatpush1.bf16.msra.mxu0 %v1372
    %1622 = vmatprep.subr.bf16.mxu0 %v1377
    %1623 = vmatpush1.bf16.msra.mxu0 %v1376
    %1624 = vmatprep.subr.bf16.mxu0 %v1381
    %1625 = vmatpush1.bf16.msra.mxu0 %v1380
    %1626 = vmatprep.subr.bf16.mxu0 %v1385
    %1627 = vmatpush1.bf16.msra.mxu0 %v1384
    %1628 = vmatprep.subr.bf16.mxu0 %v1389
    %1629 = vmatpush1.bf16.msra.mxu0 %v1388
    %1630 = vmatprep.subr.bf16.mxu0 %v1393
    %1631 = vmatpush1.bf16.msra.mxu0 %v1392
    %1632 = vmatprep.subr.bf16.mxu0 %v1397
    %1633 = vmatpush1.bf16.msra.mxu0 %v1396
    %1634 = vmatprep.subr.bf16.mxu0 %v1401
    %1635 = vmatpush1.bf16.msra.mxu0 %v1400
    %1636 = vmatprep.subr.bf16.mxu0 %v1405
    %1637 = vmatpush1.bf16.msra.mxu0 %v1404
    %1638 = vmatprep.subr.bf16.mxu0 %v1409
    %1639 = vmatpush1.bf16.msra.mxu0 %v1408
    %1640 = vmatprep.subr.bf16.mxu0 %v1413
    %1641 = vmatpush1.bf16.msra.mxu0 %v1412
    %1642 = vmatprep.subr.bf16.mxu0 %v1417
    %1643 = vmatpush1.bf16.msra.mxu0 %v1416
    %1644 = vmatprep.mubr.bf16.mxu0 %v819
    %1645 = vmatmul.mubr.bf16.gmra.mrb[0].mxu0 %v818
    %v1646 = vpop.f32.mrb[0].mxu0
    %v1647 = vadd.f32 %v955, %v1646
    %v1648 = vpop.f32.mrb[0].mxu0
    %v1649 = vadd.f32 %v959, %v1648
    %v1650 = vpop.f32.mrb[0].mxu0
    %v1651 = vadd.f32 %v955, %v1650
    %v1652 = vpop.f32.mrb[0].mxu0
    %v1653 = vadd.f32 %v959, %v1652
    %1654 = vdwg.mxu0
    %1655 = vmatprep.subr.bf16.mxu0 %v1421
    %1656 = vmatpush1.bf16.msra.mxu0 %v1420
    %1657 = vmatprep.subr.bf16.mxu0 %v1425
    %1658 = vmatpush1.bf16.msra.mxu0 %v1424
    %1659 = vmatprep.subr.bf16.mxu0 %v1429
    %1660 = vmatpush1.bf16.msra.mxu0 %v1428
    %1661 = vmatprep.subr.bf16.mxu0 %v1433
    %1662 = vmatpush1.bf16.msra.mxu0 %v1432
    %1663 = vmatprep.subr.bf16.mxu0 %v1437
    %1664 = vmatpush1.bf16.msra.mxu0 %v1436
    %1665 = vmatprep.subr.bf16.mxu0 %v1441
    %1666 = vmatpush1.bf16.msra.mxu0 %v1440
    %1667 = vmatprep.subr.bf16.mxu0 %v1445
    %1668 = vmatpush1.bf16.msra.mxu0 %v1444
    %1669 = vmatprep.subr.bf16.mxu0 %v1449
    %1670 = vmatpush1.bf16.msra.mxu0 %v1448
    %1671 = vmatprep.subr.bf16.mxu0 %v1453
    %1672 = vmatpush1.bf16.msra.mxu0 %v1452
    %1673 = vmatprep.subr.bf16.mxu0 %v1457
    %1674 = vmatpush1.bf16.msra.mxu0 %v1456
    %1675 = vmatprep.subr.bf16.mxu0 %v1461
    %1676 = vmatpush1.bf16.msra.mxu0 %v1460
    %1677 = vmatprep.subr.bf16.mxu0 %v1465
    %1678 = vmatpush1.bf16.msra.mxu0 %v1464
    %1679 = vmatprep.subr.bf16.mxu0 %v1469
    %1680 = vmatpush1.bf16.msra.mxu0 %v1468
    %1681 = vmatprep.subr.bf16.mxu0 %v1473
    %1682 = vmatpush1.bf16.msra.mxu0 %v1472
    %1683 = vmatprep.subr.bf16.mxu0 %v1477
    %1684 = vmatpush1.bf16.msra.mxu0 %v1476
    %1685 = vmatprep.subr.bf16.mxu0 %v1481
    %1686 = vmatpush1.bf16.msra.mxu0 %v1480
    %1687 = vmatprep.mubr.bf16.mxu0 %v821
    %1688 = vmatmul.mubr.bf16.gmra.mrb[0].mxu0 %v820
    %v1689 = vpop.f32.mrb[0].mxu0
    %v1690 = vadd.f32 %v1647, %v1689
    %v1691 = vpop.f32.mrb[0].mxu0
    %v1692 = vadd.f32 %v1649, %v1691
    %v1693 = vpop.f32.mrb[0].mxu0
    %v1694 = vadd.f32 %v1651, %v1693
    %v1695 = vpop.f32.mrb[0].mxu0
    %v1696 = vadd.f32 %v1653, %v1695
    %1697 = vdwg.mxu0
    %1698 = vmatprep.subr.bf16.mxu0 %v1359
    %1699 = vmatpush1.bf16.msra.mxu0 %v1358
    %1700 = vmatprep.subr.bf16.mxu0 %v1363
    %1701 = vmatpush1.bf16.msra.mxu0 %v1362
    %1702 = vmatprep.subr.bf16.mxu0 %v1367
    %1703 = vmatpush1.bf16.msra.mxu0 %v1366
    %1704 = vmatprep.subr.bf16.mxu0 %v1371
    %1705 = vmatpush1.bf16.msra.mxu0 %v1370
    %1706 = vmatprep.subr.bf16.mxu0 %v1375
    %1707 = vmatpush1.bf16.msra.mxu0 %v1374
    %1708 = vmatprep.subr.bf16.mxu0 %v1379
    %1709 = vmatpush1.bf16.msra.mxu0 %v1378
    %1710 = vmatprep.subr.bf16.mxu0 %v1383
    %1711 = vmatpush1.bf16.msra.mxu0 %v1382
    %1712 = vmatprep.subr.bf16.mxu0 %v1387
    %1713 = vmatpush1.bf16.msra.mxu0 %v1386
    %1714 = vmatprep.subr.bf16.mxu0 %v1391
    %1715 = vmatpush1.bf16.msra.mxu0 %v1390
    %1716 = vmatprep.subr.bf16.mxu0 %v1395
    %1717 = vmatpush1.bf16.msra.mxu0 %v1394
    %1718 = vmatprep.subr.bf16.mxu0 %v1399
    %1719 = vmatpush1.bf16.msra.mxu0 %v1398
    %1720 = vmatprep.subr.bf16.mxu0 %v1403
    %1721 = vmatpush1.bf16.msra.mxu0 %v1402
    %1722 = vmatprep.subr.bf16.mxu0 %v1407
    %1723 = vmatpush1.bf16.msra.mxu0 %v1406
    %1724 = vmatprep.subr.bf16.mxu0 %v1411
    %1725 = vmatpush1.bf16.msra.mxu0 %v1410
    %1726 = vmatprep.subr.bf16.mxu0 %v1415
    %1727 = vmatpush1.bf16.msra.mxu0 %v1414
    %1728 = vmatprep.subr.bf16.mxu0 %v1419
    %1729 = vmatpush1.bf16.msra.mxu0 %v1418
    %1730 = vmatprep.mubr.bf16.mxu0 %v819
    %1731 = vmatmul.mubr.bf16.gmra.mrb[0].mxu0 %v818
    %v1732 = vpop.f32.mrb[0].mxu0
    %v1733 = vadd.f32 %v963, %v1732
    %v1734 = vpop.f32.mrb[0].mxu0
    %v1735 = vadd.f32 %v967, %v1734
    %v1736 = vpop.f32.mrb[0].mxu0
    %v1737 = vadd.f32 %v963, %v1736
    %v1738 = vpop.f32.mrb[0].mxu0
    %v1739 = vadd.f32 %v967, %v1738
    %1740 = vdwg.mxu0
    %1741 = vmatprep.subr.bf16.mxu0 %v1423
    %1742 = vmatpush1.bf16.msra.mxu0 %v1422
    %1743 = vmatprep.subr.bf16.mxu0 %v1427
    %1744 = vmatpush1.bf16.msra.mxu0 %v1426
    %1745 = vmatprep.subr.bf16.mxu0 %v1431
    %1746 = vmatpush1.bf16.msra.mxu0 %v1430
    %1747 = vmatprep.subr.bf16.mxu0 %v1435
    %1748 = vmatpush1.bf16.msra.mxu0 %v1434
    %1749 = vmatprep.subr.bf16.mxu0 %v1439
    %1750 = vmatpush1.bf16.msra.mxu0 %v1438
    %1751 = vmatprep.subr.bf16.mxu0 %v1443
    %1752 = vmatpush1.bf16.msra.mxu0 %v1442
    %1753 = vmatprep.subr.bf16.mxu0 %v1447
    %1754 = vmatpush1.bf16.msra.mxu0 %v1446
    %1755 = vmatprep.subr.bf16.mxu0 %v1451
    %1756 = vmatpush1.bf16.msra.mxu0 %v1450
    %1757 = vmatprep.subr.bf16.mxu0 %v1455
    %1758 = vmatpush1.bf16.msra.mxu0 %v1454
    %1759 = vmatprep.subr.bf16.mxu0 %v1459
    %1760 = vmatpush1.bf16.msra.mxu0 %v1458
    %1761 = vmatprep.subr.bf16.mxu0 %v1463
    %1762 = vmatpush1.bf16.msra.mxu0 %v1462
    %1763 = vmatprep.subr.bf16.mxu0 %v1467
    %1764 = vmatpush1.bf16.msra.mxu0 %v1466
    %1765 = vmatprep.subr.bf16.mxu0 %v1471
    %1766 = vmatpush1.bf16.msra.mxu0 %v1470
    %1767 = vmatprep.subr.bf16.mxu0 %v1475
    %1768 = vmatpush1.bf16.msra.mxu0 %v1474
    %1769 = vmatprep.subr.bf16.mxu0 %v1479
    %1770 = vmatpush1.bf16.msra.mxu0 %v1478
    %1771 = vmatprep.subr.bf16.mxu0 %v1483
    %1772 = vmatpush1.bf16.msra.mxu0 %v1482
    %1773 = vmatprep.mubr.bf16.mxu0 %v821
    %1774 = vmatmul.mubr.bf16.gmra.mrb[0].mxu0 %v820
    %v1775 = vpop.f32.mrb[0].mxu0
    %v1776 = vadd.f32 %v1733, %v1775
    %v1777 = vpop.f32.mrb[0].mxu0
    %v1778 = vadd.f32 %v1735, %v1777
    %v1779 = vpop.f32.mrb[0].mxu0
    %v1780 = vadd.f32 %v1737, %v1779
    %v1781 = vpop.f32.mrb[0].mxu0
    %v1782 = vadd.f32 %v1739, %v1781
    %1783 = vdwg.mxu0
    %v1784 = vpack.c.bf16 %v1694, %v1690
    %v1785 = vpack.c.bf16 %v1696, %v1692
    %v1786 = vpack.c.bf16 %v1780, %v1776
    %v1787 = vpack.c.bf16 %v1782, %v1778
    %v1788 = vld [vmem:[%s5] sm:$0xff]
    %v1789 = vld [vmem:[%s5 + $0x8] sm:$0xff]
    %v1790 = vld [vmem:[%s5 + $0x10] sm:$0xff]
    %v1791 = vld [vmem:[%s5 + $0x18] sm:$0xff]
    %v1792 = vld [vmem:[%s5 + $0x20] sm:$0xff]
    %v1793 = vld [vmem:[%s5 + $0x28] sm:$0xff]
    %v1794 = vld [vmem:[%s5 + $0x30] sm:$0xff]
    %v1795 = vld [vmem:[%s5 + $0x38] sm:$0xff]
    %v1796 = vld [vmem:[%s5 + $0x40] sm:$0xff]
    %v1797 = vld [vmem:[%s5 + $0x48] sm:$0xff]
    %v1798 = vld [vmem:[%s5 + $0x50] sm:$0xff]
    %v1799 = vld [vmem:[%s5 + $0x58] sm:$0xff]
    %v1800 = vld [vmem:[%s5 + $0x60] sm:$0xff]
    %v1801 = vld [vmem:[%s5 + $0x68] sm:$0xff]
    %v1802 = vld [vmem:[%s5 + $0x70] sm:$0xff]
    %v1803 = vld [vmem:[%s5 + $0x78] sm:$0xff]
    %v1804 = vld [vmem:[%s5 + $0x80] sm:$0xff]
    %v1805 = vld [vmem:[%s5 + $0x88] sm:$0xff]
    %v1806 = vld [vmem:[%s5 + $0x90] sm:$0xff]
    %v1807 = vld [vmem:[%s5 + $0x98] sm:$0xff]
    %v1808 = vld [vmem:[%s5 + $0xa0] sm:$0xff]
    %v1809 = vld [vmem:[%s5 + $0xa8] sm:$0xff]
    %v1810 = vld [vmem:[%s5 + $0xb0] sm:$0xff]
    %v1811 = vld [vmem:[%s5 + $0xb8] sm:$0xff]
    %v1812 = vld [vmem:[%s5 + $0xc0] sm:$0xff]
    %v1813 = vld [vmem:[%s5 + $0xc8] sm:$0xff]
    %v1814 = vld [vmem:[%s5 + $0xd0] sm:$0xff]
    %v1815 = vld [vmem:[%s5 + $0xd8] sm:$0xff]
    %v1816 = vld [vmem:[%s5 + $0xe0] sm:$0xff]
    %v1817 = vld [vmem:[%s5 + $0xe8] sm:$0xff]
    %v1818 = vld [vmem:[%s5 + $0xf0] sm:$0xff]
    %v1819 = vld [vmem:[%s5 + $0xf8] sm:$0xff]
    %v1820 = vld [vmem:[%s5 + $0x100] sm:$0xff]
    %v1821 = vld [vmem:[%s5 + $0x108] sm:$0xff]
    %v1822 = vld [vmem:[%s5 + $0x110] sm:$0xff]
    %v1823 = vld [vmem:[%s5 + $0x118] sm:$0xff]
    %v1824 = vld [vmem:[%s5 + $0x120] sm:$0xff]
    %v1825 = vld [vmem:[%s5 + $0x128] sm:$0xff]
    %v1826 = vld [vmem:[%s5 + $0x130] sm:$0xff]
    %v1827 = vld [vmem:[%s5 + $0x138] sm:$0xff]
    %v1828 = vld [vmem:[%s5 + $0x140] sm:$0xff]
    %v1829 = vld [vmem:[%s5 + $0x148] sm:$0xff]
    %v1830 = vld [vmem:[%s5 + $0x150] sm:$0xff]
    %v1831 = vld [vmem:[%s5 + $0x158] sm:$0xff]
    %v1832 = vld [vmem:[%s5 + $0x160] sm:$0xff]
    %v1833 = vld [vmem:[%s5 + $0x168] sm:$0xff]
    %v1834 = vld [vmem:[%s5 + $0x170] sm:$0xff]
    %v1835 = vld [vmem:[%s5 + $0x178] sm:$0xff]
    %v1836 = vld [vmem:[%s5 + $0x180] sm:$0xff]
    %v1837 = vld [vmem:[%s5 + $0x188] sm:$0xff]
    %v1838 = vld [vmem:[%s5 + $0x190] sm:$0xff]
    %v1839 = vld [vmem:[%s5 + $0x198] sm:$0xff]
    %v1840 = vld [vmem:[%s5 + $0x1a0] sm:$0xff]
    %v1841 = vld [vmem:[%s5 + $0x1a8] sm:$0xff]
    %v1842 = vld [vmem:[%s5 + $0x1b0] sm:$0xff]
    %v1843 = vld [vmem:[%s5 + $0x1b8] sm:$0xff]
    %v1844 = vld [vmem:[%s5 + $0x1c0] sm:$0xff]
    %v1845 = vld [vmem:[%s5 + $0x1c8] sm:$0xff]
    %v1846 = vld [vmem:[%s5 + $0x1d0] sm:$0xff]
    %v1847 = vld [vmem:[%s5 + $0x1d8] sm:$0xff]
    %v1848 = vld [vmem:[%s5 + $0x1e0] sm:$0xff]
    %v1849 = vld [vmem:[%s5 + $0x1e8] sm:$0xff]
    %v1850 = vld [vmem:[%s5 + $0x1f0] sm:$0xff]
    %v1851 = vld [vmem:[%s5 + $0x1f8] sm:$0xff]
    %v1852 = vld [vmem:[%s6] sm:$0x3]
    %v1854 = vlaneseq
    %v1855 = vshrl.u32 %v1854, 7
    %v1856 = vsub.s32 0, %v1855
    %v1857 = vrot.slane %v1852, %v1856
    %v1858 = vlaneseq
    %v1859 = vshrl.u32 %v1858, 7
    %v1860 = vsub.s32 1, %v1859
    %v1861 = vrot.slane %v1852, %v1860
    %v1928 = vunpack.c.l.b16 %v1788
    %v1929 = vunpack.c.h.b16 %v1788
    %v1930 = vunpack.c.l.b16 %v1789
    %v1931 = vunpack.c.h.b16 %v1789
    %v1932 = vunpack.c.l.b16 %v1790
    %v1933 = vunpack.c.h.b16 %v1790
    %v1934 = vunpack.c.l.b16 %v1791
    %v1935 = vunpack.c.h.b16 %v1791
    %v1936 = vunpack.c.l.b16 %v1792
    %v1937 = vunpack.c.h.b16 %v1792
    %v1938 = vunpack.c.l.b16 %v1793
    %v1939 = vunpack.c.h.b16 %v1793
    %v1940 = vunpack.c.l.b16 %v1794
    %v1941 = vunpack.c.h.b16 %v1794
    %v1942 = vunpack.c.l.b16 %v1795
    %v1943 = vunpack.c.h.b16 %v1795
    %v1944 = vunpack.c.l.b16 %v1796
    %v1945 = vunpack.c.h.b16 %v1796
    %v1946 = vunpack.c.l.b16 %v1797
    %v1947 = vunpack.c.h.b16 %v1797
    %v1948 = vunpack.c.l.b16 %v1798
    %v1949 = vunpack.c.h.b16 %v1798
    %v1950 = vunpack.c.l.b16 %v1799
    %v1951 = vunpack.c.h.b16 %v1799
    %v1952 = vunpack.c.l.b16 %v1800
    %v1953 = vunpack.c.h.b16 %v1800
    %v1954 = vunpack.c.l.b16 %v1801
    %v1955 = vunpack.c.h.b16 %v1801
    %v1956 = vunpack.c.l.b16 %v1802
    %v1957 = vunpack.c.h.b16 %v1802
    %v1958 = vunpack.c.l.b16 %v1803
    %v1959 = vunpack.c.h.b16 %v1803
    %v1960 = vunpack.c.l.b16 %v1804
    %v1961 = vunpack.c.h.b16 %v1804
    %v1962 = vunpack.c.l.b16 %v1805
    %v1963 = vunpack.c.h.b16 %v1805
    %v1964 = vunpack.c.l.b16 %v1806
    %v1965 = vunpack.c.h.b16 %v1806
    %v1966 = vunpack.c.l.b16 %v1807
    %v1967 = vunpack.c.h.b16 %v1807
    %v1968 = vunpack.c.l.b16 %v1808
    %v1969 = vunpack.c.h.b16 %v1808
    %v1970 = vunpack.c.l.b16 %v1809
    %v1971 = vunpack.c.h.b16 %v1809
    %v1972 = vunpack.c.l.b16 %v1810
    %v1973 = vunpack.c.h.b16 %v1810
    %v1974 = vunpack.c.l.b16 %v1811
    %v1975 = vunpack.c.h.b16 %v1811
    %v1976 = vunpack.c.l.b16 %v1812
    %v1977 = vunpack.c.h.b16 %v1812
    %v1978 = vunpack.c.l.b16 %v1813
    %v1979 = vunpack.c.h.b16 %v1813
    %v1980 = vunpack.c.l.b16 %v1814
    %v1981 = vunpack.c.h.b16 %v1814
    %v1982 = vunpack.c.l.b16 %v1815
    %v1983 = vunpack.c.h.b16 %v1815
    %v1984 = vunpack.c.l.b16 %v1816
    %v1985 = vunpack.c.h.b16 %v1816
    %v1986 = vunpack.c.l.b16 %v1817
    %v1987 = vunpack.c.h.b16 %v1817
    %v1988 = vunpack.c.l.b16 %v1818
    %v1989 = vunpack.c.h.b16 %v1818
    %v1990 = vunpack.c.l.b16 %v1819
    %v1991 = vunpack.c.h.b16 %v1819
    %v1992 = vunpack.c.l.b16 %v1820
    %v1993 = vunpack.c.h.b16 %v1820
    %v1994 = vunpack.c.l.b16 %v1821
    %v1995 = vunpack.c.h.b16 %v1821
    %v1996 = vunpack.c.l.b16 %v1822
    %v1997 = vunpack.c.h.b16 %v1822
    %v1998 = vunpack.c.l.b16 %v1823
    %v1999 = vunpack.c.h.b16 %v1823
    %v2000 = vunpack.c.l.b16 %v1824
    %v2001 = vunpack.c.h.b16 %v1824
    %v2002 = vunpack.c.l.b16 %v1825
    %v2003 = vunpack.c.h.b16 %v1825
    %v2004 = vunpack.c.l.b16 %v1826
    %v2005 = vunpack.c.h.b16 %v1826
    %v2006 = vunpack.c.l.b16 %v1827
    %v2007 = vunpack.c.h.b16 %v1827
    %v2008 = vunpack.c.l.b16 %v1828
    %v2009 = vunpack.c.h.b16 %v1828
    %v2010 = vunpack.c.l.b16 %v1829
    %v2011 = vunpack.c.h.b16 %v1829
    %v2012 = vunpack.c.l.b16 %v1830
    %v2013 = vunpack.c.h.b16 %v1830
    %v2014 = vunpack.c.l.b16 %v1831
    %v2015 = vunpack.c.h.b16 %v1831
    %v2016 = vunpack.c.l.b16 %v1832
    %v2017 = vunpack.c.h.b16 %v1832
    %v2018 = vunpack.c.l.b16 %v1833
    %v2019 = vunpack.c.h.b16 %v1833
    %v2020 = vunpack.c.l.b16 %v1834
    %v2021 = vunpack.c.h.b16 %v1834
    %v2022 = vunpack.c.l.b16 %v1835
    %v2023 = vunpack.c.h.b16 %v1835
    %v2024 = vunpack.c.l.b16 %v1836
    %v2025 = vunpack.c.h.b16 %v1836
    %v2026 = vunpack.c.l.b16 %v1837
    %v2027 = vunpack.c.h.b16 %v1837
    %v2028 = vunpack.c.l.b16 %v1838
    %v2029 = vunpack.c.h.b16 %v1838
    %v2030 = vunpack.c.l.b16 %v1839
    %v2031 = vunpack.c.h.b16 %v1839
    %v2032 = vunpack.c.l.b16 %v1840
    %v2033 = vunpack.c.h.b16 %v1840
    %v2034 = vunpack.c.l.b16 %v1841
    %v2035 = vunpack.c.h.b16 %v1841
    %v2036 = vunpack.c.l.b16 %v1842
    %v2037 = vunpack.c.h.b16 %v1842
    %v2038 = vunpack.c.l.b16 %v1843
    %v2039 = vunpack.c.h.b16 %v1843
    %v2040 = vunpack.c.l.b16 %v1844
    %v2041 = vunpack.c.h.b16 %v1844
    %v2042 = vunpack.c.l.b16 %v1845
    %v2043 = vunpack.c.h.b16 %v1845
    %v2044 = vunpack.c.l.b16 %v1846
    %v2045 = vunpack.c.h.b16 %v1846
    %v2046 = vunpack.c.l.b16 %v1847
    %v2047 = vunpack.c.h.b16 %v1847
    %v2048 = vunpack.c.l.b16 %v1848
    %v2049 = vunpack.c.h.b16 %v1848
    %v2050 = vunpack.c.l.b16 %v1849
    %v2051 = vunpack.c.h.b16 %v1849
    %v2052 = vunpack.c.l.b16 %v1850
    %v2053 = vunpack.c.h.b16 %v1850
    %v2054 = vunpack.c.l.b16 %v1851
    %v2055 = vunpack.c.h.b16 %v1851
    %v2056 = vpack.c.b16 %v1930, %v1928
    %v2057 = vpack.c.b16 %v1931, %v1929
    %v2058 = vpack.c.b16 %v1934, %v1932
    %v2059 = vpack.c.b16 %v1935, %v1933
    %v2060 = vpack.c.b16 %v1938, %v1936
    %v2061 = vpack.c.b16 %v1939, %v1937
    %v2062 = vpack.c.b16 %v1942, %v1940
    %v2063 = vpack.c.b16 %v1943, %v1941
    %v2064 = vpack.c.b16 %v1946, %v1944
    %v2065 = vpack.c.b16 %v1947, %v1945
    %v2066 = vpack.c.b16 %v1950, %v1948
    %v2067 = vpack.c.b16 %v1951, %v1949
    %v2068 = vpack.c.b16 %v1954, %v1952
    %v2069 = vpack.c.b16 %v1955, %v1953
    %v2070 = vpack.c.b16 %v1958, %v1956
    %v2071 = vpack.c.b16 %v1959, %v1957
    %v2072 = vpack.c.b16 %v1962, %v1960
    %v2073 = vpack.c.b16 %v1963, %v1961
    %v2074 = vpack.c.b16 %v1966, %v1964
    %v2075 = vpack.c.b16 %v1967, %v1965
    %v2076 = vpack.c.b16 %v1970, %v1968
    %v2077 = vpack.c.b16 %v1971, %v1969
    %v2078 = vpack.c.b16 %v1974, %v1972
    %v2079 = vpack.c.b16 %v1975, %v1973
    %v2080 = vpack.c.b16 %v1978, %v1976
    %v2081 = vpack.c.b16 %v1979, %v1977
    %v2082 = vpack.c.b16 %v1982, %v1980
    %v2083 = vpack.c.b16 %v1983, %v1981
    %v2084 = vpack.c.b16 %v1986, %v1984
    %v2085 = vpack.c.b16 %v1987, %v1985
    %v2086 = vpack.c.b16 %v1990, %v1988
    %v2087 = vpack.c.b16 %v1991, %v1989
    %v2088 = vpack.c.b16 %v1994, %v1992
    %v2089 = vpack.c.b16 %v1995, %v1993
    %v2090 = vpack.c.b16 %v1998, %v1996
    %v2091 = vpack.c.b16 %v1999, %v1997
    %v2092 = vpack.c.b16 %v2002, %v2000
    %v2093 = vpack.c.b16 %v2003, %v2001
    %v2094 = vpack.c.b16 %v2006, %v2004
    %v2095 = vpack.c.b16 %v2007, %v2005
    %v2096 = vpack.c.b16 %v2010, %v2008
    %v2097 = vpack.c.b16 %v2011, %v2009
    %v2098 = vpack.c.b16 %v2014, %v2012
    %v2099 = vpack.c.b16 %v2015, %v2013
    %v2100 = vpack.c.b16 %v2018, %v2016
    %v2101 = vpack.c.b16 %v2019, %v2017
    %v2102 = vpack.c.b16 %v2022, %v2020
    %v2103 = vpack.c.b16 %v2023, %v2021
    %v2104 = vpack.c.b16 %v2026, %v2024
    %v2105 = vpack.c.b16 %v2027, %v2025
    %v2106 = vpack.c.b16 %v2030, %v2028
    %v2107 = vpack.c.b16 %v2031, %v2029
    %v2108 = vpack.c.b16 %v2034, %v2032
    %v2109 = vpack.c.b16 %v2035, %v2033
    %v2110 = vpack.c.b16 %v2038, %v2036
    %v2111 = vpack.c.b16 %v2039, %v2037
    %v2112 = vpack.c.b16 %v2042, %v2040
    %v2113 = vpack.c.b16 %v2043, %v2041
    %v2114 = vpack.c.b16 %v2046, %v2044
    %v2115 = vpack.c.b16 %v2047, %v2045
    %v2116 = vpack.c.b16 %v2050, %v2048
    %v2117 = vpack.c.b16 %v2051, %v2049
    %v2118 = vpack.c.b16 %v2054, %v2052
    %v2119 = vpack.c.b16 %v2055, %v2053
    %2184 = vmatprep.subr.bf16.mxu0 %v2057
    %2185 = vmatpush1.bf16.msra.mxu0 %v2056
    %2186 = vmatprep.subr.bf16.mxu0 %v2059
    %2187 = vmatpush1.bf16.msra.mxu0 %v2058
    %2188 = vmatprep.subr.bf16.mxu0 %v2061
    %2189 = vmatpush1.bf16.msra.mxu0 %v2060
    %2190 = vmatprep.subr.bf16.mxu0 %v2063
    %2191 = vmatpush1.bf16.msra.mxu0 %v2062
    %2192 = vmatprep.subr.bf16.mxu0 %v2065
    %2193 = vmatpush1.bf16.msra.mxu0 %v2064
    %2194 = vmatprep.subr.bf16.mxu0 %v2067
    %2195 = vmatpush1.bf16.msra.mxu0 %v2066
    %2196 = vmatprep.subr.bf16.mxu0 %v2069
    %2197 = vmatpush1.bf16.msra.mxu0 %v2068
    %2198 = vmatprep.subr.bf16.mxu0 %v2071
    %2199 = vmatpush1.bf16.msra.mxu0 %v2070
    %2200 = vmatprep.subr.bf16.mxu0 %v2073
    %2201 = vmatpush1.bf16.msra.mxu0 %v2072
    %2202 = vmatprep.subr.bf16.mxu0 %v2075
    %2203 = vmatpush1.bf16.msra.mxu0 %v2074
    %2204 = vmatprep.subr.bf16.mxu0 %v2077
    %2205 = vmatpush1.bf16.msra.mxu0 %v2076
    %2206 = vmatprep.subr.bf16.mxu0 %v2079
    %2207 = vmatpush1.bf16.msra.mxu0 %v2078
    %2208 = vmatprep.subr.bf16.mxu0 %v2081
    %2209 = vmatpush1.bf16.msra.mxu0 %v2080
    %2210 = vmatprep.subr.bf16.mxu0 %v2083
    %2211 = vmatpush1.bf16.msra.mxu0 %v2082
    %2212 = vmatprep.subr.bf16.mxu0 %v2085
    %2213 = vmatpush1.bf16.msra.mxu0 %v2084
    %2214 = vmatprep.subr.bf16.mxu0 %v2087
    %2215 = vmatpush1.bf16.msra.mxu0 %v2086
    %2216 = vmatprep.mubr.bf16.mxu0 %v1785
    %2217 = vmatmul.mubr.bf16.gmra.mrb[0].mxu0 %v1784
    %v2218 = vpop.f32.mrb[0].mxu0
    %v2219 = vadd.f32 %v1857, %v2218
    %v2220 = vpop.f32.mrb[0].mxu0
    %v2221 = vadd.f32 %v1861, %v2220
    %v2222 = vpop.f32.mrb[0].mxu0
    %v2223 = vadd.f32 %v1857, %v2222
    %v2224 = vpop.f32.mrb[0].mxu0
    %v2225 = vadd.f32 %v1861, %v2224
    %2226 = vdwg.mxu0
    %2227 = vmatprep.subr.bf16.mxu0 %v2089
    %2228 = vmatpush1.bf16.msra.mxu0 %v2088
    %2229 = vmatprep.subr.bf16.mxu0 %v2091
    %2230 = vmatpush1.bf16.msra.mxu0 %v2090
    %2231 = vmatprep.subr.bf16.mxu0 %v2093
    %2232 = vmatpush1.bf16.msra.mxu0 %v2092
    %2233 = vmatprep.subr.bf16.mxu0 %v2095
    %2234 = vmatpush1.bf16.msra.mxu0 %v2094
    %2235 = vmatprep.subr.bf16.mxu0 %v2097
    %2236 = vmatpush1.bf16.msra.mxu0 %v2096
    %2237 = vmatprep.subr.bf16.mxu0 %v2099
    %2238 = vmatpush1.bf16.msra.mxu0 %v2098
    %2239 = vmatprep.subr.bf16.mxu0 %v2101
    %2240 = vmatpush1.bf16.msra.mxu0 %v2100
    %2241 = vmatprep.subr.bf16.mxu0 %v2103
    %2242 = vmatpush1.bf16.msra.mxu0 %v2102
    %2243 = vmatprep.subr.bf16.mxu0 %v2105
    %2244 = vmatpush1.bf16.msra.mxu0 %v2104
    %2245 = vmatprep.subr.bf16.mxu0 %v2107
    %2246 = vmatpush1.bf16.msra.mxu0 %v2106
    %2247 = vmatprep.subr.bf16.mxu0 %v2109
    %2248 = vmatpush1.bf16.msra.mxu0 %v2108
    %2249 = vmatprep.subr.bf16.mxu0 %v2111
    %2250 = vmatpush1.bf16.msra.mxu0 %v2110
    %2251 = vmatprep.subr.bf16.mxu0 %v2113
    %2252 = vmatpush1.bf16.msra.mxu0 %v2112
    %2253 = vmatprep.subr.bf16.mxu0 %v2115
    %2254 = vmatpush1.bf16.msra.mxu0 %v2114
    %2255 = vmatprep.subr.bf16.mxu0 %v2117
    %2256 = vmatpush1.bf16.msra.mxu0 %v2116
    %2257 = vmatprep.subr.bf16.mxu0 %v2119
    %2258 = vmatpush1.bf16.msra.mxu0 %v2118
    %2259 = vmatprep.mubr.bf16.mxu0 %v1787
    %2260 = vmatmul.mubr.bf16.gmra.mrb[0].mxu0 %v1786
    %v2261 = vpop.f32.mrb[0].mxu0
    %v2262 = vadd.f32 %v2219, %v2261
    %v2263 = vpop.f32.mrb[0].mxu0
    %v2264 = vadd.f32 %v2221, %v2263
    %v2265 = vpop.f32.mrb[0].mxu0
    %v2266 = vadd.f32 %v2223, %v2265
    %v2267 = vpop.f32.mrb[0].mxu0
    %v2268 = vadd.f32 %v2225, %v2267
    %2269 = vdwg.mxu0
    %2270 = vst [vmem:[#allocation2] sm:$0xff] %v2262
    %2271 = vst [vmem:[#allocation2 + $0x8] sm:$0xff] %v2264
    %2272 = vst [vmem:[#allocation2 + $0x10] sm:$0xff] %v2266
    %2273 = vst [vmem:[#allocation2 + $0x18] sm:$0xff] %v2268
    // Predicated region
    $region30: #{forward.1} parent=1 // pred_check
      _
    $region31: #{forward.1} parent=1 // pred_check_branch
      %2275 = sbr.rel (0) target = $region33
    $region32: #{forward.1} parent=1 // pred_region
      %s2277 = ssub.s32 512, 512
      %2278 = vsyncadd [#allocation3], %s2277
      %s2279 = sshll.u32 [#allocation2], 4
      %s2280 = int_to_ptr.vmem [resolvable:$true] %s2279
      %2285 = dma.vmem_to_hbm [thread:$0]  %s2280, 512, %s7, [#allocation3], 256, 256, 16
    $region33: #{forward.1} parent=1 // pred_fallthru
      _
    // Predicated region
    $region34: #{forward.1} parent=1 // pred_check
      _
    $region35: #{forward.1} parent=1 // pred_check_branch
      %2287 = sbr.rel (0) target = $region37
    $region36: #{forward.1} parent=1 // pred_region
      %2288 = dma.done [#allocation3], 512
    $region37: #{forward.1} parent=1 // pred_fallthru
      _
    %2289 = vsyncpa [#allocation3], 1

</llo_original>
